<compile_context>
chip_gen: v7x
topology: tpu7x:2x2x1
jax: 0.10.0
libtpu: 0.0.40
codegen_flags: <defaults>
</compile_context>

<pallas_src>
import functools

import jax
import jax.numpy as jnp
from jax.experimental import pallas as pl
from jax.experimental.pallas import tpu as pltpu


# ----------------------------------------------------------------------------
# Helpers: per-generation VMEM limit and tile pickers.
# ----------------------------------------------------------------------------
def _vmem_limit_bytes():
    cap = 64 * 1024 * 1024            # assume the smallest generation if unknown
    try:
        info_cap = getattr(pltpu.get_tpu_info(), "vmem_capacity_bytes", None)
        if info_cap:
            cap = int(info_cap)
    except Exception:
        pass
    # 3/4 of physical, clamped to [32 MiB, 96 MiB]:
    #   v5e/v6e (128 MiB) -> 96 MiB ; v7x (64 MiB per TC) -> 48 MiB.
    return max(32 * 1024 * 1024, min(96 * 1024 * 1024, cap * 3 // 4))


def _pick_tn(cout, kc, w_budget_bytes=16 * 1024 * 1024):
    """Largest output-channel tile so the (2, kc, tn) bf16 weight slab,
    double-buffered, stays under the budget.  tn divides cout and is
    lane-dense (multiple of 128) unless it is the full cout."""
    max_tn = max(1, w_budget_bytes // (8 * kc))
    if cout <= max_tn:
        return cout
    t = (max_tn // 128) * 128
    while t >= 128:
        if cout % t == 0:
            return t
        t -= 128
    return cout  # no nice divisor found -> keep full (only hit for odd shapes)


def _pick_tm(ho, wo, kc, a_budget_bytes=2 * 1024 * 1024, row_cap=1024):
    """Output-row tile: a multiple of wo that divides ho*wo, bounded so the
    bf16 activation block stays small (double-buffered by the pipeline)."""
    cap = max(wo, min(row_cap, a_budget_bytes // (2 * kc)))
    best = wo
    for k in range(1, ho + 1):
        if ho % k == 0 and k * wo <= cap:
            best = max(best, k * wo)
    return best


# ----------------------------------------------------------------------------
# Pallas kernels: fused 2-tap conv GEMM (+bias, +LeakyReLU(0.01)),
# weights resident in VMEM, no K reduction grid axis.
# ----------------------------------------------------------------------------
def _conv_tap_kernel_halo(a_ref, h_ref, w_ref, b_ref, o_ref, *, wo, lrelu):
    """Row-tiled variant.
    a_ref : (TM, Kc)   rows [m0, m0+TM) of the flattened space-to-depth activation
    h_ref : (wo, Kc)   halo rows [m0+TM, m0+TM+wo)  (qh=1 tap of the last rows)
    w_ref : (2, Kc, TN) per-height-tap weight matrices (VMEM resident)
    b_ref : (1, TN)    bias (f32)
    o_ref : (TM, TN)   output block (bf16)
    """
    a = a_ref[...]
    tm = a.shape[0]
    if tm > wo:
        a1 = jnp.concatenate([a[wo:], h_ref[...]], axis=0)   # rows shifted by wo
    else:
        a1 = h_ref[...]
    acc = jnp.dot(a, w_ref[0], preferred_element_type=jnp.float32)
    acc = acc + jnp.dot(a1, w_ref[1], preferred_element_type=jnp.float32)
    out = acc + b_ref[...]
    if lrelu:
        out = jnp.where(out >= 0, out, 0.01 * out)
    o_ref[...] = out.astype(o_ref.dtype)


def _conv_tap_kernel_full(a_ref, w_ref, b_ref, o_ref, *, wo, mo, lrelu):
    """Small-spatial variant: the whole per-batch activation slab is one block
    (no alignment constraints needed), both height taps are sliced from it."""
    a = a_ref[...]                                  # ((ho+1)*wo, Kc)
    acc = jnp.dot(a[:mo], w_ref[0], preferred_element_type=jnp.float32)
    acc = acc + jnp.dot(a[wo:wo + mo], w_ref[1], preferred_element_type=jnp.float32)
    out = acc + b_ref[...]
    if lrelu:
        out = jnp.where(out >= 0, out, 0.01 * out)
    o_ref[...] = out.astype(o_ref.dtype)


# ----------------------------------------------------------------------------
# lax.conv fallbacks (stem conv with tiny Cin, tiny heads, odd shapes).
# ----------------------------------------------------------------------------
def _lax_conv(x_nhwc, w_oihw, stride, padding):
    w_hwio = jnp.transpose(w_oihw, (2, 3, 1, 0)).astype(jnp.bfloat16)
    return jax.lax.conv_general_dilated(
        x_nhwc.astype(jnp.bfloat16), w_hwio,
        window_strides=(stride, stride),
        padding=[(padding, padding), (padding, padding)],
        dimension_numbers=("NHWC", "HWIO", "NHWC"),
        preferred_element_type=jnp.float32)


def _lax_conv_bias_act(x_nhwc, w_oihw, bias, stride, padding, lrelu):
    out = _lax_conv(x_nhwc, w_oihw, stride, padding)
    if bias is not None:
        out = out + bias[None, None, None, :]
    if lrelu:
        out = jnp.where(out >= 0, out, 0.01 * out)
    return out.astype(jnp.bfloat16)


# ----------------------------------------------------------------------------
# Fused Pallas trunk conv: 4x4, stride 2, pad 1, +bias, +LeakyReLU(0.01).
# ----------------------------------------------------------------------------
def conv4x4s2_pallas(h, w_oihw, bias, *, lrelu=True):
    """h: (B, H, W, Cin) bf16/f32, w_oihw: (Cout, Cin, 4, 4). Returns bf16 NHWC."""
    B, H, W, Cin = h.shape
    Cout = w_oihw.shape[0]
    if H % 2 or W % 2:
        # The space-to-depth trick assumes even spatial dims; punt (never hit
        # for the power-of-two image sizes this module is built for).
        return _lax_conv_bias_act(h, w_oihw, bias, 2, 1, lrelu)

    Ho, Wo = H // 2, W // 2
    Kc = 8 * Cin                    # (qw, rh, rw, cin)
    Mo = Ho * Wo                    # output rows per batch element
    rows = (Ho + 1) * Wo            # activation rows per batch element (incl. halo)

    use_halo = (Wo % 8 == 0)        # sublane alignment for the halo BlockSpec
    if not use_halo and rows * Kc * 2 > 8 * 1024 * 1024:
        # unaligned AND too big to hold a whole per-batch slab in VMEM -> rare; punt.
        return _lax_conv_bias_act(h, w_oihw, bias, 2, 1, lrelu)

    # ---- glue: pad + space-to-depth + width-tap packing (pure layout, bf16) ----
    hb = h.astype(jnp.bfloat16)
    hp = jnp.pad(hb, ((0, 0), (1, 1), (1, 1), (0, 0)))
    Hs, Ws = Ho + 1, Wo + 1
    s2d = hp.reshape(B, Hs, 2, Ws, 2, Cin)
    s2d = s2d.transpose(0, 1, 3, 2, 4, 5).reshape(B, Hs, Ws, 4 * Cin)
    # Pack the two width taps into channels: (B, Hs, Wo, 8*Cin) ~ 2x activation.
    y = jnp.concatenate([s2d[:, :, :Wo, :], s2d[:, :, 1:, :]], axis=-1)
    y_flat = y.reshape(B, rows, Kc)

    # Per-height-tap weight matrices, K packed as (qw, rh, rw, cin).
    w6 = w_oihw.reshape(Cout, Cin, 2, 2, 2, 2)            # (cout, c, qh, rh, qw, rw)
    w2 = jnp.transpose(w6, (2, 4, 3, 5, 1, 0)).reshape(2, Kc, Cout).astype(jnp.bfloat16)
    b2 = bias if bias is not None else jnp.zeros((Cout,), jnp.float32)
    b2 = b2.astype(jnp.float32).reshape(1, Cout)

    tn = _pick_tn(Cout, Kc)
    n_blocks = Cout // tn
    out_shape = jax.ShapeDtypeStruct((B, Mo, Cout), jnp.bfloat16)
    cparams = pltpu.CompilerParams(
        dimension_semantics=("parallel",) * (3 if use_halo else 2),
        vmem_limit_bytes=_vmem_limit_bytes(),
    )

    if use_halo:
        tm = _pick_tm(Ho, Wo, Kc)
        halo_step = tm // Wo        # halo block index step (block size Wo)
        grid = (n_blocks, B, Mo // tm)   # N outermost -> each W tile DMA'd once
        out = pl.pallas_call(
            functools.partial(_conv_tap_kernel_halo, wo=Wo, lrelu=lrelu),
            out_shape=out_shape,
            grid_spec=pltpu.PrefetchScalarGridSpec(
                num_scalar_prefetch=0,
                grid=grid,
                in_specs=[
                    pl.BlockSpec((None, tm, Kc), lambda j, b, i: (b, i, 0)),
                    pl.BlockSpec((None, Wo, Kc),
                                 lambda j, b, i: (b, (i + 1) * halo_step, 0)),
                    pl.BlockSpec((2, Kc, tn), lambda j, b, i: (0, 0, j)),
                    pl.BlockSpec((1, tn), lambda j, b, i: (0, j)),
                ],
                out_specs=pl.BlockSpec((None, tm, tn), lambda j, b, i: (b, i, j)),
            ),
            compiler_params=cparams,
        )(y_flat, y_flat, w2, b2)
    else:
        grid = (n_blocks, B)
        out = pl.pallas_call(
            functools.partial(_conv_tap_kernel_full, wo=Wo, mo=Mo, lrelu=lrelu),
            out_shape=out_shape,
            grid_spec=pltpu.PrefetchScalarGridSpec(
                num_scalar_prefetch=0,
                grid=grid,
                in_specs=[
                    pl.BlockSpec((None, rows, Kc), lambda j, b: (b, 0, 0)),
                    pl.BlockSpec((2, Kc, tn), lambda j, b: (0, 0, j)),
                    pl.BlockSpec((1, tn), lambda j, b: (0, j)),
                ],
                out_specs=pl.BlockSpec((None, Mo, tn), lambda j, b: (b, 0, j)),
            ),
            compiler_params=cparams,
        )(y_flat, w2, b2)

    return out.reshape(B, Ho, Wo, Cout)


# ----------------------------------------------------------------------------
# Model definition (deterministic parameter init) and forward pass.
# ----------------------------------------------------------------------------
def init_params(key, input_nc, ndf, n_layers, vdim, img_size):
    params = {}
    keys = jax.random.split(key, n_layers + 3)
    # first conv: bias=True (nn.Conv2d default)
    params["w0"] = 0.05 * jax.random.normal(keys[0], (ndf, input_nc, 4, 4), jnp.float32)
    params["b0"] = 0.01 * jax.random.normal(keys[1], (ndf,), jnp.float32)
    cur = ndf
    for n in range(1, n_layers):
        # use_bias=False since norm_layer defaults to nn.InstanceNorm2d (note: the
        # PyTorch module never actually applies the norm layer, only uses it to
        # decide the bias flag, so no normalization appears in the forward pass).
        params[f"w{n}"] = 0.05 * jax.random.normal(
            keys[1 + n], (cur * 2, cur, 4, 4), jnp.float32)
        cur *= 2
    fs = img_size // 2 ** n_layers
    params["w_src"] = 0.05 * jax.random.normal(keys[-2], (1, cur, 4, 4), jnp.float32)
    params["w_cls"] = 0.05 * jax.random.normal(keys[-1], (vdim, cur, fs, fs), jnp.float32)
    return params


def stargan_discriminator(x_nchw, params, n_layers, vdim):
    """Forward pass. x_nchw: (B, C, H, W). Returns (out_src NCHW, out_cls (B, vdim))."""
    B = x_nchw.shape[0]
    x = jnp.transpose(x_nchw, (0, 2, 3, 1))          # NCHW -> NHWC
    # Stem: Cin = input_nc (e.g. 3) -> K = 8*Cin is tiny; XLA's small-channel conv
    # path avoids padding that K up to MXU lanes on the highest-resolution layer.
    h = _lax_conv_bias_act(x, params["w0"], params["b0"], 2, 1, True)
    # Trunk: fused Pallas conv + bias + LeakyReLU(0.01), bf16 activations between layers.
    for n in range(1, n_layers):
        h = conv4x4s2_pallas(h, params[f"w{n}"], None, lrelu=True)
    # Tiny heads (Cout=1 / 1x1-spatial output): plain lax.conv.
    out_src = _lax_conv(h, params["w_src"], 1, 1)
    out_cls = _lax_conv(h, params["w_cls"], 1, 0)
    out_src = jnp.transpose(out_src, (0, 3, 1, 2))   # back to NCHW
    out_cls = out_cls.reshape(B, vdim)               # (B, 1, 1, vdim) -> (B, vdim)
    return out_src, out_cls


# ----------------------------------------------------------------------------
# Pure-JAX f32 reference (for correctness check).
# ----------------------------------------------------------------------------
def _ref_conv(x_nhwc, w_oihw, bias, stride, padding, lrelu):
    w_hwio = jnp.transpose(w_oihw, (2, 3, 1, 0))
    out = jax.lax.conv_general_dilated(
        x_nhwc, w_hwio, window_strides=(stride, stride),
        padding=[(padding, padding), (padding, padding)],
        dimension_numbers=("NHWC", "HWIO", "NHWC"))
    if bias is not None:
        out = out + bias[None, None, None, :]
    if lrelu:
        out = jnp.where(out >= 0, out, 0.01 * out)
    return out


def _ref_forward(x_nchw, params, n_layers, vdim):
    B = x_nchw.shape[0]
    x = jnp.transpose(x_nchw, (0, 2, 3, 1))
    h = _ref_conv(x, params["w0"], params["b0"], 2, 1, True)
    for n in range(1, n_layers):
        h = _ref_conv(h, params[f"w{n}"], None, 2, 1, True)
    out_src = _ref_conv(h, params["w_src"], None, 1, 1, False)
    out_cls = _ref_conv(h, params["w_cls"], None, 1, 0, False)
    return jnp.transpose(out_src, (0, 3, 1, 2)), out_cls.reshape(B, vdim)


if __name__ == "__main__":
    # Small config consistent with the module's construction rules.  img_size /
    # n_layers are chosen so the trunk exercises BOTH Pallas variants
    # (row-tiled halo kernel on the 16x16 and 8x8 outputs, whole-slab kernel on
    # the 4x4 output) plus the lax.conv stem and heads.
    B, input_nc, ndf, n_layers, vdim, img_size = 2, 3, 8, 4, 5, 64

    key = jax.random.PRNGKey(0)
    k_x, k_p = jax.random.split(key)
    x = jax.random.normal(k_x, (B, input_nc, img_size, img_size), jnp.float32)
    params = init_params(k_p, input_nc, ndf, n_layers, vdim, img_size)

    fwd = jax.jit(functools.partial(stargan_discriminator, n_layers=n_layers, vdim=vdim))
    out_src, out_cls = fwd(x, params)
    out_src = jax.block_until_ready(out_src)
    out_cls = jax.block_until_ready(out_cls)

    # Sanity check vs the pure-f32 JAX reference (the Pallas path uses bf16
    # operands / inter-layer activations with f32 MXU accumulation).
    ref_src, ref_cls = _ref_forward(x, params, n_layers, vdim)
    fs = img_size // 2 ** n_layers
    assert out_src.shape == (B, 1, fs - 1, fs - 1), out_src.shape
    assert out_cls.shape == (B, vdim), out_cls.shape
    assert jnp.allclose(out_src.astype(jnp.float32), ref_src, atol=3e-2, rtol=3e-2), (
        float(jnp.max(jnp.abs(out_src.astype(jnp.float32) - ref_src))))
    assert jnp.allclose(out_cls.astype(jnp.float32), ref_cls, atol=3e-2, rtol=3e-2), (
        float(jnp.max(jnp.abs(out_cls.astype(jnp.float32) - ref_cls))))

    print("KERNEL_OK")
</pallas_src>

<mosaic_0001>
module attributes {stable_mosaic.version = 11 : i64} {
  func.func @_conv_tap_kernel_halo(%arg0: i32, %arg1: i32, %arg2: i32, %arg3: memref<1x256x64xbf16, #tpu.memory_space<vmem>>, %arg4: memref<1x16x64xbf16, #tpu.memory_space<vmem>>, %arg5: memref<2x64x16xbf16, #tpu.memory_space<vmem>>, %arg6: memref<1x16xf32, #tpu.memory_space<vmem>>, %arg7: memref<1x256x16xbf16, #tpu.memory_space<vmem>>) attributes {dimension_semantics = [#tpu.dimension_semantics<parallel>, #tpu.dimension_semantics<parallel>, #tpu.dimension_semantics<parallel>], iteration_bounds = array<i64: 1, 2, 1>, scalar_prefetch = 0 : i64, scratch_operands = 0 : i64, tpu.core_type = #tpu.core_type<tc>, window_params = [{transform_indices = @transform_0, window_bounds = array<i64: 1, 256, 64>}, {transform_indices = @transform_1, window_bounds = array<i64: 1, 16, 64>}, {transform_indices = @transform_2, window_bounds = array<i64: 2, 64, 16>}, {transform_indices = @transform_3, window_bounds = array<i64: 1, 16>}, {transform_indices = @transform_4, window_bounds = array<i64: 1, 256, 16>}]} {
    %c0 = arith.constant 0 : index
    %c0_0 = arith.constant 0 : index
    %c0_1 = arith.constant 0 : index
    %0 = vector.load %arg3[%c0, %c0_0, %c0_1] : memref<1x256x64xbf16, #tpu.memory_space<vmem>>, vector<1x256x64xbf16>
    %1 = vector.shape_cast %0 : vector<1x256x64xbf16> to vector<256x64xbf16>
    %2 = vector.extract_strided_slice %1 {offsets = [16, 0], sizes = [240, 64], strides = [1, 1]} : vector<256x64xbf16> to vector<240x64xbf16>
    %c0_2 = arith.constant 0 : index
    %c0_3 = arith.constant 0 : index
    %c0_4 = arith.constant 0 : index
    %3 = vector.load %arg4[%c0_2, %c0_3, %c0_4] : memref<1x16x64xbf16, #tpu.memory_space<vmem>>, vector<1x16x64xbf16>
    %4 = vector.shape_cast %3 : vector<1x16x64xbf16> to vector<16x64xbf16>
    %5 = tpu.concatenate %2, %4 in 0 : vector<240x64xbf16>, vector<16x64xbf16> -> vector<256x64xbf16>
    %c0_5 = arith.constant 0 : index
    %c0_6 = arith.constant 0 : index
    %c0_7 = arith.constant 0 : index
    %6 = vector.load %arg5[%c0_5, %c0_6, %c0_7] : memref<2x64x16xbf16, #tpu.memory_space<vmem>>, vector<1x64x16xbf16>
    %7 = vector.shape_cast %6 : vector<1x64x16xbf16> to vector<64x16xbf16>
    %cst = arith.constant dense<0.000000e+00> : vector<256x16xf32>
    %8 = tpu.matmul %1, %7, %cst {dimension_numbers = #tpu.dot_dimension_numbers<[1], [0], [0], [1], [0, 0, 1, 1], [], []>} : vector<256x64xbf16>, vector<64x16xbf16>, vector<256x16xf32> -> vector<256x16xf32>
    %c1 = arith.constant 1 : index
    %c0_8 = arith.constant 0 : index
    %c0_9 = arith.constant 0 : index
    %9 = vector.load %arg5[%c1, %c0_8, %c0_9] : memref<2x64x16xbf16, #tpu.memory_space<vmem>>, vector<1x64x16xbf16>
    %10 = vector.shape_cast %9 : vector<1x64x16xbf16> to vector<64x16xbf16>
    %cst_10 = arith.constant dense<0.000000e+00> : vector<256x16xf32>
    %11 = tpu.matmul %5, %10, %cst_10 {dimension_numbers = #tpu.dot_dimension_numbers<[1], [0], [0], [1], [0, 0, 1, 1], [], []>} : vector<256x64xbf16>, vector<64x16xbf16>, vector<256x16xf32> -> vector<256x16xf32>
    %12 = arith.addf %8, %11 : vector<256x16xf32>
    %c0_11 = arith.constant 0 : index
    %c0_12 = arith.constant 0 : index
    %13 = vector.load %arg6[%c0_11, %c0_12] : memref<1x16xf32, #tpu.memory_space<vmem>>, vector<1x16xf32>
    %14 = vector.broadcast %13 : vector<1x16xf32> to vector<256x16xf32>
    %15 = arith.addf %12, %14 : vector<256x16xf32>
    %cst_13 = arith.constant 0.000000e+00 : f32
    %16 = vector.broadcast %cst_13 : f32 to vector<256x16xf32>
    %17 = arith.cmpf oge, %15, %16 : vector<256x16xf32>
    %cst_14 = arith.constant 0.00999999977 : f32
    %18 = vector.broadcast %cst_14 : f32 to vector<256x16xf32>
    %19 = arith.mulf %18, %15 : vector<256x16xf32>
    %20 = arith.select %17, %15, %19 : vector<256x16xi1>, vector<256x16xf32>
    %21 = arith.truncf %20 : vector<256x16xf32> to vector<256x16xbf16>
    %c0_15 = arith.constant 0 : index
    %c0_16 = arith.constant 0 : index
    %c0_17 = arith.constant 0 : index
    %22 = vector.load %arg7[%c0_15, %c0_16, %c0_17] : memref<1x256x16xbf16, #tpu.memory_space<vmem>>, vector<1x256x16xbf16>
    %23 = vector.shape_cast %22 : vector<1x256x16xbf16> to vector<256x16xbf16>
    %24 = vector.shape_cast %21 : vector<256x16xbf16> to vector<1x256x16xbf16>
    tpu.vector_store %arg7[%c0_15, %c0_16, %c0_17], %24 {strides = array<i32>} : memref<1x256x16xbf16, #tpu.memory_space<vmem>>, vector<1x256x16xbf16>,
    return
  }
  func.func @transform_0(%arg0: i32, %arg1: i32, %arg2: i32) -> (i32, i32, i32) {
    %c0_i32 = arith.constant 0 : i32
    %c0_i32_0 = arith.constant 0 : i32
    return %arg1, %arg2, %c0_i32 : i32, i32, i32
  }
  func.func @transform_1(%arg0: i32, %arg1: i32, %arg2: i32) -> (i32, i32, i32) {
    %c1_i32 = arith.constant 1 : i32
    %0 = arith.addi %arg2, %c1_i32 : i32
    %c16_i32 = arith.constant 16 : i32
    %1 = arith.muli %0, %c16_i32 : i32
    %c0_i32 = arith.constant 0 : i32
    %c0_i32_0 = arith.constant 0 : i32
    return %arg1, %1, %c0_i32 : i32, i32, i32
  }
  func.func @transform_2(%arg0: i32, %arg1: i32, %arg2: i32) -> (i32, i32, i32) {
    %c0_i32 = arith.constant 0 : i32
    %c0_i32_0 = arith.constant 0 : i32
    %c0_i32_1 = arith.constant 0 : i32
    return %c0_i32, %c0_i32_0, %arg0 : i32, i32, i32
  }
  func.func @transform_3(%arg0: i32, %arg1: i32, %arg2: i32) -> (i32, i32) {
    %c0_i32 = arith.constant 0 : i32
    %c0_i32_0 = arith.constant 0 : i32
    return %c0_i32, %arg0 : i32, i32
  }
  func.func @transform_4(%arg0: i32, %arg1: i32, %arg2: i32) -> (i32, i32, i32) {
    %c0_i32 = arith.constant 0 : i32
    return %arg1, %arg2, %arg0 : i32, i32, i32
  }
}

module attributes {stable_mosaic.version = 11 : i64} {
  func.func @_conv_tap_kernel_halo(%arg0: i32, %arg1: i32, %arg2: i32, %arg3: memref<1x64x128xbf16, #tpu.memory_space<vmem>>, %arg4: memref<1x8x128xbf16, #tpu.memory_space<vmem>>, %arg5: memref<2x128x32xbf16, #tpu.memory_space<vmem>>, %arg6: memref<1x32xf32, #tpu.memory_space<vmem>>, %arg7: memref<1x64x32xbf16, #tpu.memory_space<vmem>>) attributes {dimension_semantics = [#tpu.dimension_semantics<parallel>, #tpu.dimension_semantics<parallel>, #tpu.dimension_semantics<parallel>], iteration_bounds = array<i64: 1, 2, 1>, scalar_prefetch = 0 : i64, scratch_operands = 0 : i64, tpu.core_type = #tpu.core_type<tc>, window_params = [{transform_indices = @transform_0, window_bounds = array<i64: 1, 64, 128>}, {transform_indices = @transform_1, window_bounds = array<i64: 1, 8, 128>}, {transform_indices = @transform_2, window_bounds = array<i64: 2, 128, 32>}, {transform_indices = @transform_3, window_bounds = array<i64: 1, 32>}, {transform_indices = @transform_4, window_bounds = array<i64: 1, 64, 32>}]} {
    %c0 = arith.constant 0 : index
    %c0_0 = arith.constant 0 : index
    %c0_1 = arith.constant 0 : index
    %0 = vector.load %arg3[%c0, %c0_0, %c0_1] : memref<1x64x128xbf16, #tpu.memory_space<vmem>>, vector<1x64x128xbf16>
    %1 = vector.shape_cast %0 : vector<1x64x128xbf16> to vector<64x128xbf16>
    %2 = vector.extract_strided_slice %1 {offsets = [8, 0], sizes = [56, 128], strides = [1, 1]} : vector<64x128xbf16> to vector<56x128xbf16>
    %c0_2 = arith.constant 0 : index
    %c0_3 = arith.constant 0 : index
    %c0_4 = arith.constant 0 : index
    %3 = vector.load %arg4[%c0_2, %c0_3, %c0_4] : memref<1x8x128xbf16, #tpu.memory_space<vmem>>, vector<1x8x128xbf16>
    %4 = vector.shape_cast %3 : vector<1x8x128xbf16> to vector<8x128xbf16>
    %5 = tpu.concatenate %2, %4 in 0 : vector<56x128xbf16>, vector<8x128xbf16> -> vector<64x128xbf16>
    %c0_5 = arith.constant 0 : index
    %c0_6 = arith.constant 0 : index
    %c0_7 = arith.constant 0 : index
    %6 = vector.load %arg5[%c0_5, %c0_6, %c0_7] : memref<2x128x32xbf16, #tpu.memory_space<vmem>>, vector<1x128x32xbf16>
    %7 = vector.shape_cast %6 : vector<1x128x32xbf16> to vector<128x32xbf16>
    %cst = arith.constant dense<0.000000e+00> : vector<64x32xf32>
    %8 = tpu.matmul %1, %7, %cst {dimension_numbers = #tpu.dot_dimension_numbers<[1], [0], [0], [1], [0, 0, 1, 1], [], []>} : vector<64x128xbf16>, vector<128x32xbf16>, vector<64x32xf32> -> vector<64x32xf32>
    %c1 = arith.constant 1 : index
    %c0_8 = arith.constant 0 : index
    %c0_9 = arith.constant 0 : index
    %9 = vector.load %arg5[%c1, %c0_8, %c0_9] : memref<2x128x32xbf16, #tpu.memory_space<vmem>>, vector<1x128x32xbf16>
    %10 = vector.shape_cast %9 : vector<1x128x32xbf16> to vector<128x32xbf16>
    %cst_10 = arith.constant dense<0.000000e+00> : vector<64x32xf32>
    %11 = tpu.matmul %5, %10, %cst_10 {dimension_numbers = #tpu.dot_dimension_numbers<[1], [0], [0], [1], [0, 0, 1, 1], [], []>} : vector<64x128xbf16>, vector<128x32xbf16>, vector<64x32xf32> -> vector<64x32xf32>
    %12 = arith.addf %8, %11 : vector<64x32xf32>
    %c0_11 = arith.constant 0 : index
    %c0_12 = arith.constant 0 : index
    %13 = vector.load %arg6[%c0_11, %c0_12] : memref<1x32xf32, #tpu.memory_space<vmem>>, vector<1x32xf32>
    %14 = vector.broadcast %13 : vector<1x32xf32> to vector<64x32xf32>
    %15 = arith.addf %12, %14 : vector<64x32xf32>
    %cst_13 = arith.constant 0.000000e+00 : f32
    %16 = vector.broadcast %cst_13 : f32 to vector<64x32xf32>
    %17 = arith.cmpf oge, %15, %16 : vector<64x32xf32>
    %cst_14 = arith.constant 0.00999999977 : f32
    %18 = vector.broadcast %cst_14 : f32 to vector<64x32xf32>
    %19 = arith.mulf %18, %15 : vector<64x32xf32>
    %20 = arith.select %17, %15, %19 : vector<64x32xi1>, vector<64x32xf32>
    %21 = arith.truncf %20 : vector<64x32xf32> to vector<64x32xbf16>
    %c0_15 = arith.constant 0 : index
    %c0_16 = arith.constant 0 : index
    %c0_17 = arith.constant 0 : index
    %22 = vector.load %arg7[%c0_15, %c0_16, %c0_17] : memref<1x64x32xbf16, #tpu.memory_space<vmem>>, vector<1x64x32xbf16>
    %23 = vector.shape_cast %22 : vector<1x64x32xbf16> to vector<64x32xbf16>
    %24 = vector.shape_cast %21 : vector<64x32xbf16> to vector<1x64x32xbf16>
    tpu.vector_store %arg7[%c0_15, %c0_16, %c0_17], %24 {strides = array<i32>} : memref<1x64x32xbf16, #tpu.memory_space<vmem>>, vector<1x64x32xbf16>,
    return
  }
  func.func @transform_0(%arg0: i32, %arg1: i32, %arg2: i32) -> (i32, i32, i32) {
    %c0_i32 = arith.constant 0 : i32
    %c0_i32_0 = arith.constant 0 : i32
    return %arg1, %arg2, %c0_i32 : i32, i32, i32
  }
  func.func @transform_1(%arg0: i32, %arg1: i32, %arg2: i32) -> (i32, i32, i32) {
    %c1_i32 = arith.constant 1 : i32
    %0 = arith.addi %arg2, %c1_i32 : i32
    %c8_i32 = arith.constant 8 : i32
    %1 = arith.muli %0, %c8_i32 : i32
    %c0_i32 = arith.constant 0 : i32
    %c0_i32_0 = arith.constant 0 : i32
    return %arg1, %1, %c0_i32 : i32, i32, i32
  }
  func.func @transform_2(%arg0: i32, %arg1: i32, %arg2: i32) -> (i32, i32, i32) {
    %c0_i32 = arith.constant 0 : i32
    %c0_i32_0 = arith.constant 0 : i32
    %c0_i32_1 = arith.constant 0 : i32
    return %c0_i32, %c0_i32_0, %arg0 : i32, i32, i32
  }
  func.func @transform_3(%arg0: i32, %arg1: i32, %arg2: i32) -> (i32, i32) {
    %c0_i32 = arith.constant 0 : i32
    %c0_i32_0 = arith.constant 0 : i32
    return %c0_i32, %arg0 : i32, i32
  }
  func.func @transform_4(%arg0: i32, %arg1: i32, %arg2: i32) -> (i32, i32, i32) {
    %c0_i32 = arith.constant 0 : i32
    return %arg1, %arg2, %arg0 : i32, i32, i32
  }
}

module attributes {stable_mosaic.version = 11 : i64} {
  func.func @_conv_tap_kernel_full(%arg0: i32, %arg1: i32, %arg2: memref<1x20x256xbf16, #tpu.memory_space<vmem>>, %arg3: memref<2x256x64xbf16, #tpu.memory_space<vmem>>, %arg4: memref<1x64xf32, #tpu.memory_space<vmem>>, %arg5: memref<1x16x64xbf16, #tpu.memory_space<vmem>>) attributes {dimension_semantics = [#tpu.dimension_semantics<parallel>, #tpu.dimension_semantics<parallel>], iteration_bounds = array<i64: 1, 2>, scalar_prefetch = 0 : i64, scratch_operands = 0 : i64, tpu.core_type = #tpu.core_type<tc>, window_params = [{transform_indices = @transform_0, window_bounds = array<i64: 1, 20, 256>}, {transform_indices = @transform_1, window_bounds = array<i64: 2, 256, 64>}, {transform_indices = @transform_2, window_bounds = array<i64: 1, 64>}, {transform_indices = @transform_3, window_bounds = array<i64: 1, 16, 64>}]} {
    %c0 = arith.constant 0 : index
    %c0_0 = arith.constant 0 : index
    %c0_1 = arith.constant 0 : index
    %0 = vector.load %arg2[%c0, %c0_0, %c0_1] : memref<1x20x256xbf16, #tpu.memory_space<vmem>>, vector<1x20x256xbf16>
    %1 = vector.shape_cast %0 : vector<1x20x256xbf16> to vector<20x256xbf16>
    %2 = vector.extract_strided_slice %1 {offsets = [0, 0], sizes = [16, 256], strides = [1, 1]} : vector<20x256xbf16> to vector<16x256xbf16>
    %c0_2 = arith.constant 0 : index
    %c0_3 = arith.constant 0 : index
    %c0_4 = arith.constant 0 : index
    %3 = vector.load %arg3[%c0_2, %c0_3, %c0_4] : memref<2x256x64xbf16, #tpu.memory_space<vmem>>, vector<1x256x64xbf16>
    %4 = vector.shape_cast %3 : vector<1x256x64xbf16> to vector<256x64xbf16>
    %cst = arith.constant dense<0.000000e+00> : vector<16x64xf32>
    %5 = tpu.matmul %2, %4, %cst {dimension_numbers = #tpu.dot_dimension_numbers<[1], [0], [0], [1], [0, 0, 1, 1], [], []>} : vector<16x256xbf16>, vector<256x64xbf16>, vector<16x64xf32> -> vector<16x64xf32>
    %6 = vector.extract_strided_slice %1 {offsets = [4, 0], sizes = [16, 256], strides = [1, 1]} : vector<20x256xbf16> to vector<16x256xbf16>
    %c1 = arith.constant 1 : index
    %c0_5 = arith.constant 0 : index
    %c0_6 = arith.constant 0 : index
    %7 = vector.load %arg3[%c1, %c0_5, %c0_6] : memref<2x256x64xbf16, #tpu.memory_space<vmem>>, vector<1x256x64xbf16>
    %8 = vector.shape_cast %7 : vector<1x256x64xbf16> to vector<256x64xbf16>
    %cst_7 = arith.constant dense<0.000000e+00> : vector<16x64xf32>
    %9 = tpu.matmul %6, %8, %cst_7 {dimension_numbers = #tpu.dot_dimension_numbers<[1], [0], [0], [1], [0, 0, 1, 1], [], []>} : vector<16x256xbf16>, vector<256x64xbf16>, vector<16x64xf32> -> vector<16x64xf32>
    %10 = arith.addf %5, %9 : vector<16x64xf32>
    %c0_8 = arith.constant 0 : index
    %c0_9 = arith.constant 0 : index
    %11 = vector.load %arg4[%c0_8, %c0_9] : memref<1x64xf32, #tpu.memory_space<vmem>>, vector<1x64xf32>
    %12 = vector.broadcast %11 : vector<1x64xf32> to vector<16x64xf32>
    %13 = arith.addf %10, %12 : vector<16x64xf32>
    %cst_10 = arith.constant 0.000000e+00 : f32
    %14 = vector.broadcast %cst_10 : f32 to vector<16x64xf32>
    %15 = arith.cmpf oge, %13, %14 : vector<16x64xf32>
    %cst_11 = arith.constant 0.00999999977 : f32
    %16 = vector.broadcast %cst_11 : f32 to vector<16x64xf32>
    %17 = arith.mulf %16, %13 : vector<16x64xf32>
    %18 = arith.select %15, %13, %17 : vector<16x64xi1>, vector<16x64xf32>
    %19 = arith.truncf %18 : vector<16x64xf32> to vector<16x64xbf16>
    %c0_12 = arith.constant 0 : index
    %c0_13 = arith.constant 0 : index
    %c0_14 = arith.constant 0 : index
    %20 = vector.load %arg5[%c0_12, %c0_13, %c0_14] : memref<1x16x64xbf16, #tpu.memory_space<vmem>>, vector<1x16x64xbf16>
    %21 = vector.shape_cast %20 : vector<1x16x64xbf16> to vector<16x64xbf16>
    %22 = vector.shape_cast %19 : vector<16x64xbf16> to vector<1x16x64xbf16>
    tpu.vector_store %arg5[%c0_12, %c0_13, %c0_14], %22 {strides = array<i32>} : memref<1x16x64xbf16, #tpu.memory_space<vmem>>, vector<1x16x64xbf16>,
    return
  }
  func.func @transform_0(%arg0: i32, %arg1: i32) -> (i32, i32, i32) {
    %c0_i32 = arith.constant 0 : i32
    %c0_i32_0 = arith.constant 0 : i32
    %c0_i32_1 = arith.constant 0 : i32
    return %arg1, %c0_i32, %c0_i32_0 : i32, i32, i32
  }
  func.func @transform_1(%arg0: i32, %arg1: i32) -> (i32, i32, i32) {
    %c0_i32 = arith.constant 0 : i32
    %c0_i32_0 = arith.constant 0 : i32
    %c0_i32_1 = arith.constant 0 : i32
    return %c0_i32, %c0_i32_0, %arg0 : i32, i32, i32
  }
  func.func @transform_2(%arg0: i32, %arg1: i32) -> (i32, i32) {
    %c0_i32 = arith.constant 0 : i32
    %c0_i32_0 = arith.constant 0 : i32
    return %c0_i32, %arg0 : i32, i32
  }
  func.func @transform_3(%arg0: i32, %arg1: i32) -> (i32, i32, i32) {
    %c0_i32 = arith.constant 0 : i32
    %c0_i32_0 = arith.constant 0 : i32
    return %arg1, %c0_i32, %arg0 : i32, i32, i32
  }
}

</mosaic_0001>

<llo_original>
// kernel: stargan_discriminator.3
$region0: #{stargan_discriminator.3}
  #allocation0 [shape = 'u32[]', space=smem, size = 0x4, offset = 0x4, fixed_abs, tag = 'smem constant byte address 0x4 - core index']
  #allocation1 [shape = 'u32[144,128]{1,0:T(1,128)}', space=vmem, size = 0x12000, scoped, tag = 'internal scratch']
  %s0 = inlined_call_operand.vmem [shape: bf16[2,272,64], index: 0, kind: input, shape index: {}, may-alias: {0,1}]
  %s1 = inlined_call_operand.vmem [shape: bf16[2,272,64], index: 1, kind: input, shape index: {}, may-alias: {0,1}]
  %s2 = inlined_call_operand.vmem [shape: bf16[2,64,16], index: 2, kind: input, shape index: {}]
  %s3 = inlined_call_operand.vmem [shape: f32[1,16], index: 3, kind: input, shape index: {}]
  %s4 = inlined_call_operand.vmem [shape: bf16[2,256,16], index: 4, kind: output, shape index: {}]
  %s5 = sld [smem:[#allocation0]]
  $region49: #{stargan_discriminator.3} parent=0
    _
  %s7 = ssub.s32 1, %s5
  %s8 = scalar_select 0, %s7, %s5
  loop: start=0, step=1, limit=4
  $region2: #{stargan_discriminator.3} parent=0 // loop_pre_header
    _
  $region3: #{stargan_discriminator.3} parent=0 // loop_header
    %s10 = sphi 0, %s14
    %p11 = scmp.ge.s32.totalorder %s10, 4
    %s17 = sphi 0, %s36
    %s18 = sphi 0, %s32
    %s19 = sphi 0, %s28
    %s20 = sphi 0, %s17
    %s21 = sphi 0, %s18
    %s22 = sphi 0, %s19
    %s23 = sphi 0, %s20
    %s24 = sphi 0, %s21
    %s25 = sphi 0, %s22
    %s41 = sphi 0, %s43
    %s44 = sphi 0, %s41
    %s45 = sphi 0, %s44
    %s61 = sphi 0, %s45
    %s73 = sphi 0, %s75
    %s76 = sphi 0, %s73
    %s77 = sphi 0, %s76
    %s93 = sphi 0, %s77
    %s99 = sphi 0, %s101
    %s102 = sphi 0, %s99
    %s103 = sphi 0, %s102
    %s119 = sphi 0, %s103
    %s125 = sphi 0, %s127
    %s128 = sphi 0, %s125
    %s129 = sphi 0, %s128
    %s145 = sphi 0, %s129
    %s155 = sphi 0, %s157
    %s158 = sphi 0, %s155
    %s159 = sphi 0, %s158
    %s175 = sphi 0, %s159
  $region4: #{stargan_discriminator.3} parent=0 // loop_header_branch
    %13 = sbr.rel (%p11) target = $region8
  $region5: #{stargan_discriminator.3} parent=0 // loop_body
    %s15 = ssub.s32 %s10, 1
    %s16 = ssub.s32 %s10, 2
    %s26 = sadd.s32 1, %s19
    %p27 = scmp.ge.s32.totalorder %s26, 1
    %s28 = scalar_select %p27, 0, %s26
    %s29 = sadd.s32 1, %s18
    %s30 = scalar_select %p27, %s29, %s18
    %p31 = scmp.ge.s32.totalorder %s30, 2
    %s32 = scalar_select %p31, 0, %s30
    %s33 = sadd.s32 1, %s17
    %s34 = scalar_select %p31, %s33, %s17
    %p35 = scmp.ge.s32.totalorder %s34, 1
    %s36 = scalar_select %p35, 0, %s34
    %s37 = ssub.s32 %s18, %s32
    %s38 = ssub.s32 %s19, %s28
    %s39 = sor.u32 %s37, %s38
    %p40 = scmp.eq.s32.totalorder %s39, 0
    %s42 = sadd.s32 %s41, 1
    %s43 = scalar_select %p40, %s41, %s42
    %p46 = pneg %p40
    %p47 = scmp.eq.s32.totalorder %s10, 1
    %p48 = por %p46, %p47
    %p49 = scmp.ne.s32.totalorder %s41, %s44
    %p50 = scmp.eq.s32.totalorder %s10, 0
    %p51 = por %p49, %p50
    %p52 = scmp.ne.s32.totalorder %s41, %s44
    %p53 = scmp.eq.s32.totalorder %s15, 1
    %p54 = por %p52, %p53
    %p55 = scmp.ne.s32.totalorder %s44, %s45
    %p56 = scmp.eq.s32.totalorder %s15, 0
    %p57 = por %p55, %p56
    %p58 = scmp.ne.s32.totalorder %s44, %s45
    %p59 = scmp.eq.s32.totalorder %s16, 1
    %p60 = por %p58, %p59
    %p62 = scmp.ne.s32.totalorder %s45, %s61
    %p63 = scmp.eq.s32.totalorder %s16, 0
    %p64 = por %p62, %p63
    %s65 = sadd.s32 %s19, 1
    %s66 = smul.u32 %s65, 16
    %s67 = sadd.s32 %s28, 1
    %s68 = smul.u32 %s67, 16
    %s69 = ssub.s32 %s18, %s32
    %s70 = ssub.s32 %s66, %s68
    %s71 = sor.u32 %s69, %s70
    %p72 = scmp.eq.s32.totalorder %s71, 0
    %s74 = sadd.s32 %s73, 1
    %s75 = scalar_select %p72, %s73, %s74
    %p78 = pneg %p72
    %p79 = scmp.eq.s32.totalorder %s10, 1
    %p80 = por %p78, %p79
    %p81 = scmp.ne.s32.totalorder %s73, %s76
    %p82 = scmp.eq.s32.totalorder %s10, 0
    %p83 = por %p81, %p82
    %p84 = scmp.ne.s32.totalorder %s73, %s76
    %p85 = scmp.eq.s32.totalorder %s15, 1
    %p86 = por %p84, %p85
    %p87 = scmp.ne.s32.totalorder %s76, %s77
    %p88 = scmp.eq.s32.totalorder %s15, 0
    %p89 = por %p87, %p88
    %p90 = scmp.ne.s32.totalorder %s76, %s77
    %p91 = scmp.eq.s32.totalorder %s16, 1
    %p92 = por %p90, %p91
    %p94 = scmp.ne.s32.totalorder %s77, %s93
    %p95 = scmp.eq.s32.totalorder %s16, 0
    %p96 = por %p94, %p95
    %s97 = ssub.s32 %s17, %s36
    %p98 = scmp.eq.s32.totalorder %s97, 0
    %s100 = sadd.s32 %s99, 1
    %s101 = scalar_select %p98, %s99, %s100
    %p104 = pneg %p98
    %p105 = scmp.eq.s32.totalorder %s10, 1
    %p106 = por %p104, %p105
    %p107 = scmp.ne.s32.totalorder %s99, %s102
    %p108 = scmp.eq.s32.totalorder %s10, 0
    %p109 = por %p107, %p108
    %p110 = scmp.ne.s32.totalorder %s99, %s102
    %p111 = scmp.eq.s32.totalorder %s15, 1
    %p112 = por %p110, %p111
    %p113 = scmp.ne.s32.totalorder %s102, %s103
    %p114 = scmp.eq.s32.totalorder %s15, 0
    %p115 = por %p113, %p114
    %p116 = scmp.ne.s32.totalorder %s102, %s103
    %p117 = scmp.eq.s32.totalorder %s16, 1
    %p118 = por %p116, %p117
    %p120 = scmp.ne.s32.totalorder %s103, %s119
    %p121 = scmp.eq.s32.totalorder %s16, 0
    %p122 = por %p120, %p121
    %s123 = ssub.s32 %s17, %s36
    %p124 = scmp.eq.s32.totalorder %s123, 0
    %s126 = sadd.s32 %s125, 1
    %s127 = scalar_select %p124, %s125, %s126
    %p130 = pneg %p124
    %p131 = scmp.eq.s32.totalorder %s10, 1
    %p132 = por %p130, %p131
    %p133 = scmp.ne.s32.totalorder %s125, %s128
    %p134 = scmp.eq.s32.totalorder %s10, 0
    %p135 = por %p133, %p134
    %p136 = scmp.ne.s32.totalorder %s125, %s128
    %p137 = scmp.eq.s32.totalorder %s15, 1
    %p138 = por %p136, %p137
    %p139 = scmp.ne.s32.totalorder %s128, %s129
    %p140 = scmp.eq.s32.totalorder %s15, 0
    %p141 = por %p139, %p140
    %p142 = scmp.ne.s32.totalorder %s128, %s129
    %p143 = scmp.eq.s32.totalorder %s16, 1
    %p144 = por %p142, %p143
    %p146 = scmp.ne.s32.totalorder %s129, %s145
    %p147 = scmp.eq.s32.totalorder %s16, 0
    %p148 = por %p146, %p147
    %s149 = ssub.s32 %s18, %s32
    %s150 = ssub.s32 %s19, %s28
    %s151 = sor.u32 %s149, %s150
    %s152 = ssub.s32 %s17, %s36
    %s153 = sor.u32 %s151, %s152
    %p154 = scmp.eq.s32.totalorder %s153, 0
    %s156 = sadd.s32 %s155, 1
    %s157 = scalar_select %p154, %s155, %s156
    %p160 = pneg %p154
    %p161 = scmp.eq.s32.totalorder %s10, 1
    %p162 = por %p160, %p161
    %p163 = scmp.ne.s32.totalorder %s155, %s158
    %p164 = scmp.eq.s32.totalorder %s10, 0
    %p165 = por %p163, %p164
    %p166 = scmp.ne.s32.totalorder %s155, %s158
    %p167 = scmp.eq.s32.totalorder %s15, 1
    %p168 = por %p166, %p167
    %p169 = scmp.ne.s32.totalorder %s158, %s159
    %p170 = scmp.eq.s32.totalorder %s15, 0
    %p171 = por %p169, %p170
    %p172 = scmp.ne.s32.totalorder %s158, %s159
    %p173 = scmp.eq.s32.totalorder %s16, 1
    %p174 = por %p172, %p173
    %p176 = scmp.ne.s32.totalorder %s159, %s175
    %p177 = scmp.eq.s32.totalorder %s16, 0
    %p178 = por %p176, %p177
    %p179 = scmp.le.s32.totalorder 1, %s10
    %p180 = scmp.lt.s32.totalorder %s10, 3
    %p181 = pnand %p179, %p180
    %p182 = pneg %p181
    // Predicated region
    $region9: #{stargan_discriminator.3} parent=5 // pred_check
      _
    $region10: #{stargan_discriminator.3} parent=5 // pred_check_branch
      %184 = sbr.rel (%p181) target = $region12
    $region11: #{stargan_discriminator.3} parent=5 // pred_region
      %s185 = ssub.s32 %s10, 1
      // Predicated region
      $region13: #{stargan_discriminator.3} parent=11 // pred_check
        %p186 = pneg %p115
      $region14: #{stargan_discriminator.3} parent=11 // pred_check_branch
        %188 = sbr.rel (%p186) target = $region16
      $region15: #{stargan_discriminator.3} parent=11 // pred_region
        %p189 = scmp.lt.s32.totalorder %s20, 0
        %s190 = scalar_select %p189, %s20, 0
        %s191 = smul.addr %s190, 4
        %s192 = scalar_lea.vmem %s2, %s191
      $region16: #{stargan_discriminator.3} parent=11 // pred_fallthru
        _
      // Predicated region
      $region17: #{stargan_discriminator.3} parent=11 // pred_check
        %p193 = pneg %p141
      $region18: #{stargan_discriminator.3} parent=11 // pred_check_branch
        %195 = sbr.rel (%p193) target = $region20
      $region19: #{stargan_discriminator.3} parent=11 // pred_region
        %p196 = scmp.lt.s32.totalorder %s20, 0
        %s197 = scalar_select %p196, %s20, 0
        %s198 = scalar_lea.vmem %s3, %s197
      $region20: #{stargan_discriminator.3} parent=11 // pred_fallthru
        _
    $region12: #{stargan_discriminator.3} parent=5 // pred_fallthru
      _
    %p199 = scmp.lt.s32.totalorder %s10, 2
    // Predicated region
    $region21: #{stargan_discriminator.3} parent=5 // pred_check
      %p200 = pneg %p199
    $region22: #{stargan_discriminator.3} parent=5 // pred_check_branch
      %202 = sbr.rel (%p200) target = $region24
    $region23: #{stargan_discriminator.3} parent=5 // pred_region
      // Predicated region
      $region25: #{stargan_discriminator.3} parent=23 // pred_check
        %p203 = pneg %p51
      $region26: #{stargan_discriminator.3} parent=23 // pred_check_branch
        %205 = sbr.rel (%p203) target = $region28
      $region27: #{stargan_discriminator.3} parent=23 // pred_region
        %s206 = smul.u32 32, %s19
        %s207 = ssub.s32 34, %s206
        %p208 = scmp.lt.s32.totalorder %s207, 32
        %s209 = scalar_select %p208, %s207, 32
        %s210 = smul.u32 64, %s209
        %p211 = scmp.lt.s32.totalorder %s18, 1
        %s212 = scalar_select %p211, %s18, 1
        %p213 = scmp.lt.s32.totalorder %s206, 33
        %s214 = scalar_select %p213, %s206, 33
        %s215 = smul.addr %s212, 34
        %s216 = sadd.s32 %s214, %s215
        %s217 = smul.addr %s216, 4
        %s218 = scalar_lea.vmem %s0, %s217
        %s219 = smul.u32 32, %s19
        %s220 = ssub.s32 34, %s219
        %p221 = scmp.lt.s32.totalorder %s220, 32
        %s222 = scalar_select %p221, %s220, 32
        %s223 = smul.u32 64, %s222
      $region28: #{stargan_discriminator.3} parent=23 // pred_fallthru
        _
      // Predicated region
      $region29: #{stargan_discriminator.3} parent=23 // pred_check
        %p224 = pneg %p83
      $region30: #{stargan_discriminator.3} parent=23 // pred_check_branch
        %226 = sbr.rel (%p224) target = $region32
      $region31: #{stargan_discriminator.3} parent=23 // pred_region
        %s227 = sadd.s32 %s19, 1
        %s228 = smul.u32 %s227, 16
        %s229 = smul.u32 2, %s228
        %p230 = scmp.lt.s32.totalorder %s18, 1
        %s231 = scalar_select %p230, %s18, 1
        %p232 = scmp.lt.s32.totalorder %s229, 33
        %s233 = scalar_select %p232, %s229, 33
        %s234 = smul.addr %s231, 34
        %s235 = sadd.s32 %s233, %s234
        %s236 = smul.addr %s235, 4
        %s237 = scalar_lea.vmem %s1, %s236
        %s238 = sadd.s32 %s19, 1
        %s239 = smul.u32 %s238, 16
        %s240 = smul.u32 2, %s239
      $region32: #{stargan_discriminator.3} parent=23 // pred_fallthru
        _
    $region24: #{stargan_discriminator.3} parent=5 // pred_fallthru
      _
    %p241 = scmp.le.s32.totalorder 1, %s10
    %p242 = scmp.lt.s32.totalorder %s10, 3
    %p243 = pnand %p241, %p242
    %p244 = pneg %p243
    // Predicated region
    $region33: #{stargan_discriminator.3} parent=5 // pred_check
      _
    $region34: #{stargan_discriminator.3} parent=5 // pred_check_branch
      %246 = sbr.rel (%p243) target = $region36
    $region35: #{stargan_discriminator.3} parent=5 // pred_region
      %s247 = ssub.s32 %s10, 1
      %s248 = smul.u32 32, %s22
      %s249 = ssub.s32 34, %s248
      %p250 = scmp.lt.s32.totalorder %s249, 32
      %s251 = scalar_select %p250, %s249, 32
      %s252 = smul.u32 64, %s251
      %p253 = scmp.lt.s32.totalorder %s21, 1
      %s254 = scalar_select %p253, %s21, 1
      %p255 = scmp.lt.s32.totalorder %s248, 33
      %s256 = scalar_select %p255, %s248, 33
      %s257 = smul.addr %s254, 34
      %s258 = sadd.s32 %s256, %s257
      %s259 = smul.addr %s258, 4
      %s260 = scalar_lea.vmem %s0, %s259
      %p261 = pneg %p57
      %p262 = pneg %p54
      %s263 = sadd.s32 %s22, 1
      %s264 = smul.u32 %s263, 16
      %s265 = smul.u32 2, %s264
      %p266 = scmp.lt.s32.totalorder %s21, 1
      %s267 = scalar_select %p266, %s21, 1
      %p268 = scmp.lt.s32.totalorder %s265, 33
      %s269 = scalar_select %p268, %s265, 33
      %s270 = smul.addr %s267, 34
      %s271 = sadd.s32 %s269, %s270
      %s272 = smul.addr %s271, 4
      %s273 = scalar_lea.vmem %s1, %s272
      %p274 = pneg %p89
      %p275 = pneg %p86
      %p276 = scmp.lt.s32.totalorder %s20, 0
      %s277 = scalar_select %p276, %s20, 0
      %s278 = smul.addr %s277, 4
      %s279 = scalar_lea.vmem %s2, %s278
      %p280 = pneg %p115
      %p281 = pneg %p112
      %p282 = scmp.lt.s32.totalorder %s20, 0
      %s283 = scalar_select %p282, %s20, 0
      %s284 = scalar_lea.vmem %s3, %s283
      %p285 = pneg %p141
      %p286 = pneg %p138
      %p287 = pneg %p171
      %p288 = pneg %p168
      %s289 = smul.u32 32, %s22
      %p290 = scmp.lt.s32.totalorder %s21, 1
      %s291 = scalar_select %p290, %s21, 1
      %p292 = scmp.lt.s32.totalorder %s289, 31
      %s293 = scalar_select %p292, %s289, 31
      %p294 = scmp.lt.s32.totalorder %s20, 0
      %s295 = scalar_select %p294, %s20, 0
      %s296 = sadd.s32 %s295, %s293
      %s297 = smul.addr %s291, 32
      %s298 = sadd.s32 %s296, %s297
      %s299 = smul.addr %s298, 4
      %s300 = scalar_lea.vmem %s4, %s299
      %s301 = smul.u32 32, %s22
      %s302 = ssub.s32 34, %s301
      %p303 = scmp.lt.s32.totalorder %s302, 32
      %s304 = scalar_select %p303, %s302, 32
      %s305 = smul.u32 64, %s304
      %p306 = scmp.lt.s32.totalorder %s21, 1
      %s307 = scalar_select %p306, %s21, 1
      %p308 = scmp.lt.s32.totalorder %s301, 33
      %s309 = scalar_select %p308, %s301, 33
      %s310 = smul.addr %s307, 34
      %s311 = sadd.s32 %s309, %s310
      %s312 = smul.addr %s311, 4
      %s313 = scalar_lea.vmem %s0, %s312
      %s314 = smul.u32 32, %s22
      %s315 = ssub.s32 34, %s314
      %p316 = scmp.lt.s32.totalorder %s315, 32
      %s317 = scalar_select %p316, %s315, 32
      %s318 = smul.u32 64, %s317
      %s319 = sadd.s32 %s22, 1
      %s320 = smul.u32 %s319, 16
      %s321 = smul.u32 2, %s320
      %p322 = scmp.lt.s32.totalorder %s21, 1
      %s323 = scalar_select %p322, %s21, 1
      %p324 = scmp.lt.s32.totalorder %s321, 33
      %s325 = scalar_select %p324, %s321, 33
      %s326 = smul.addr %s323, 34
      %s327 = sadd.s32 %s325, %s326
      %s328 = smul.addr %s327, 4
      %s329 = scalar_lea.vmem %s1, %s328
      %s330 = sadd.s32 %s22, 1
      %s331 = smul.u32 %s330, 16
      %s332 = smul.u32 2, %s331
      %p333 = scmp.lt.s32.totalorder %s20, 0
      %s334 = scalar_select %p333, %s20, 0
      %s335 = smul.addr %s334, 4
      %s336 = scalar_lea.vmem %s2, %s335
      %p337 = scmp.lt.s32.totalorder %s20, 0
      %s338 = scalar_select %p337, %s20, 0
      %s339 = scalar_lea.vmem %s3, %s338
      %s340 = smul.u32 32, %s22
      %p341 = scmp.lt.s32.totalorder %s21, 1
      %s342 = scalar_select %p341, %s21, 1
      %p343 = scmp.lt.s32.totalorder %s340, 31
      %s344 = scalar_select %p343, %s340, 31
      %p345 = scmp.lt.s32.totalorder %s20, 0
      %s346 = scalar_select %p345, %s20, 0
      %s347 = sadd.s32 %s346, %s344
      %s348 = smul.addr %s342, 32
      %s349 = sadd.s32 %s347, %s348
      %s350 = smul.addr %s349, 4
      %s351 = scalar_lea.vmem %s4, %s350
      %s352 = smul.u32 32, %s22
      %v354 = vld [vmem:[%s313] sm:$0xf]
      %v355 = vld [vmem:[%s313 + $0x4] sm:$0xf]
      %v356 = vld [vmem:[%s313 + $0x8] sm:$0xf]
      %v357 = vld [vmem:[%s313 + $0xc] sm:$0xf]
      %v358 = vld [vmem:[%s313 + $0x10] sm:$0xf]
      %v359 = vld [vmem:[%s313 + $0x14] sm:$0xf]
      %v360 = vld [vmem:[%s313 + $0x18] sm:$0xf]
      %v361 = vld [vmem:[%s313 + $0x1c] sm:$0xf]
      %v362 = vld [vmem:[%s313 + $0x20] sm:$0xf]
      %v363 = vld [vmem:[%s313 + $0x24] sm:$0xf]
      %v364 = vld [vmem:[%s313 + $0x28] sm:$0xf]
      %v365 = vld [vmem:[%s313 + $0x2c] sm:$0xf]
      %v366 = vld [vmem:[%s313 + $0x30] sm:$0xf]
      %v367 = vld [vmem:[%s313 + $0x34] sm:$0xf]
      %v368 = vld [vmem:[%s313 + $0x38] sm:$0xf]
      %v369 = vld [vmem:[%s313 + $0x3c] sm:$0xf]
      %v370 = vld [vmem:[%s313 + $0x40] sm:$0xf]
      %v371 = vld [vmem:[%s313 + $0x44] sm:$0xf]
      %v372 = vld [vmem:[%s313 + $0x48] sm:$0xf]
      %v373 = vld [vmem:[%s313 + $0x4c] sm:$0xf]
      %v374 = vld [vmem:[%s313 + $0x50] sm:$0xf]
      %v375 = vld [vmem:[%s313 + $0x54] sm:$0xf]
      %v376 = vld [vmem:[%s313 + $0x58] sm:$0xf]
      %v377 = vld [vmem:[%s313 + $0x5c] sm:$0xf]
      %v378 = vld [vmem:[%s313 + $0x60] sm:$0xf]
      %v379 = vld [vmem:[%s313 + $0x64] sm:$0xf]
      %v380 = vld [vmem:[%s313 + $0x68] sm:$0xf]
      %v381 = vld [vmem:[%s313 + $0x6c] sm:$0xf]
      %v382 = vld [vmem:[%s313 + $0x70] sm:$0xf]
      %v383 = vld [vmem:[%s313 + $0x74] sm:$0xf]
      %v384 = vld [vmem:[%s313 + $0x78] sm:$0xf]
      %v385 = vld [vmem:[%s313 + $0x7c] sm:$0xf]
      %v386 = vld [vmem:[%s329] sm:$0xf]
      %v387 = vld [vmem:[%s329 + $0x4] sm:$0xf]
      %v418 = vunpack.c.l.b16 %v356
      %v419 = vunpack.c.l.b16 %v357
      %v420 = vunpack.c.l.b16 %v358
      %v421 = vunpack.c.l.b16 %v359
      %v422 = vunpack.c.l.b16 %v360
      %v423 = vunpack.c.l.b16 %v361
      %v424 = vunpack.c.l.b16 %v362
      %v425 = vunpack.c.l.b16 %v363
      %v426 = vunpack.c.l.b16 %v364
      %v427 = vunpack.c.l.b16 %v365
      %v428 = vunpack.c.l.b16 %v366
      %v429 = vunpack.c.l.b16 %v367
      %v430 = vunpack.c.l.b16 %v368
      %v431 = vunpack.c.l.b16 %v369
      %v432 = vunpack.c.l.b16 %v370
      %v433 = vunpack.c.l.b16 %v371
      %v434 = vunpack.c.l.b16 %v372
      %v435 = vunpack.c.l.b16 %v373
      %v436 = vunpack.c.l.b16 %v374
      %v437 = vunpack.c.l.b16 %v375
      %v438 = vunpack.c.l.b16 %v376
      %v439 = vunpack.c.l.b16 %v377
      %v440 = vunpack.c.l.b16 %v378
      %v441 = vunpack.c.l.b16 %v379
      %v442 = vunpack.c.l.b16 %v380
      %v443 = vunpack.c.l.b16 %v381
      %v444 = vunpack.c.l.b16 %v382
      %v445 = vunpack.c.l.b16 %v383
      %v446 = vunpack.c.l.b16 %v384
      %v447 = vunpack.c.l.b16 %v385
      %v448 = vpack.c.b16 %v419, %v418
      %v449 = vpack.c.b16 %v421, %v420
      %v450 = vpack.c.b16 %v423, %v422
      %v451 = vpack.c.b16 %v425, %v424
      %v452 = vpack.c.b16 %v427, %v426
      %v453 = vpack.c.b16 %v429, %v428
      %v454 = vpack.c.b16 %v431, %v430
      %v455 = vpack.c.b16 %v433, %v432
      %v456 = vpack.c.b16 %v435, %v434
      %v457 = vpack.c.b16 %v437, %v436
      %v458 = vpack.c.b16 %v439, %v438
      %v459 = vpack.c.b16 %v441, %v440
      %v460 = vpack.c.b16 %v443, %v442
      %v461 = vpack.c.b16 %v445, %v444
      %v462 = vpack.c.b16 %v447, %v446
      %v465 = vunpack.c.l.b16 %v386
      %v466 = vunpack.c.l.b16 %v387
      %v467 = vpack.c.b16 %v466, %v465
      %v468 = vld [vmem:[%s336] sm:$0xf]
      %v469 = vld [vmem:[%s336 + $0x4] sm:$0xf]
      %v470 = vld [vmem:[%s336 + $0x8] sm:$0xf]
      %v471 = vld [vmem:[%s336 + $0xc] sm:$0xf]
      %v472 = vld [vmem:[%s336 + $0x10] sm:$0xf]
      %v473 = vld [vmem:[%s336 + $0x14] sm:$0xf]
      %v474 = vld [vmem:[%s336 + $0x18] sm:$0xf]
      %v475 = vld [vmem:[%s336 + $0x1c] sm:$0xf]
      %s476 = scalar_lea.vmem %s336, 32
      %v477 = vld [vmem:[%s476] sm:$0xf]
      %v478 = vld [vmem:[%s476 + $0x4] sm:$0xf]
      %v479 = vld [vmem:[%s476 + $0x8] sm:$0xf]
      %v480 = vld [vmem:[%s476 + $0xc] sm:$0xf]
      %v481 = vld [vmem:[%s476 + $0x10] sm:$0xf]
      %v482 = vld [vmem:[%s476 + $0x14] sm:$0xf]
      %v483 = vld [vmem:[%s476 + $0x18] sm:$0xf]
      %v484 = vld [vmem:[%s476 + $0x1c] sm:$0xf]
      %v493 = vunpack.c.l.b16 %v477
      %v494 = vunpack.c.l.b16 %v478
      %v495 = vunpack.c.l.b16 %v479
      %v496 = vunpack.c.l.b16 %v480
      %v497 = vunpack.c.l.b16 %v481
      %v498 = vunpack.c.l.b16 %v482
      %v499 = vunpack.c.l.b16 %v483
      %v500 = vunpack.c.l.b16 %v484
      %v501 = vpack.c.b16 %v494, %v493
      %v502 = vpack.c.b16 %v496, %v495
      %v503 = vpack.c.b16 %v498, %v497
      %v504 = vpack.c.b16 %v500, %v499
      %vm509 = vcmask 523264
      %v511 = vsel %vm509, %v448, 0
      %v514 = vsel %vm509, %v449, 0
      %v517 = vsel %vm509, %v450, 0
      %v520 = vsel %vm509, %v451, 0
      %v523 = vsel %vm509, %v452, 0
      %v526 = vsel %vm509, %v453, 0
      %v529 = vsel %vm509, %v454, 0
      %v532 = vsel %vm509, %v455, 0
      %v535 = vsel %vm509, %v456, 0
      %v538 = vsel %vm509, %v457, 0
      %v541 = vsel %vm509, %v458, 0
      %v544 = vsel %vm509, %v459, 0
      %v547 = vsel %vm509, %v460, 0
      %v550 = vsel %vm509, %v461, 0
      %v553 = vsel %vm509, %v462, 0
      %v556 = vsel %vm509, %v467, 0
      %558 = vmatprep.subr.bf16.mxu0 0
      %559 = vmatpush1.bf16.msra.mxu0 %v501
      %560 = vmatprep.subr.bf16.mxu0 0
      %561 = vmatpush1.bf16.msra.mxu0 %v502
      %562 = vmatprep.subr.bf16.mxu0 0
      %563 = vmatpush1.bf16.msra.mxu0 %v503
      %564 = vmatprep.subr.bf16.mxu0 0
      %565 = vmatpush1.bf16.msra.mxu0 %v504
      %566 = vmatprep.subr.bf16.mxu0 0
      %567 = vmatpush1.bf16.msra.mxu0 0
      %568 = vmatprep.subr.bf16.mxu0 0
      %569 = vmatpush1.bf16.msra.mxu0 0
      %570 = vmatprep.subr.bf16.mxu0 0
      %571 = vmatpush1.bf16.msra.mxu0 0
      %572 = vmatprep.subr.bf16.mxu0 0
      %573 = vmatpush1.bf16.msra.mxu0 0
      %574 = vmatprep.subr.bf16.mxu0 0
      %575 = vmatpush1.bf16.msra.mxu0 0
      %576 = vmatprep.subr.bf16.mxu0 0
      %577 = vmatpush1.bf16.msra.mxu0 0
      %578 = vmatprep.subr.bf16.mxu0 0
      %579 = vmatpush1.bf16.msra.mxu0 0
      %580 = vmatprep.subr.bf16.mxu0 0
      %581 = vmatpush1.bf16.msra.mxu0 0
      %582 = vmatprep.subr.bf16.mxu0 0
      %583 = vmatpush1.bf16.msra.mxu0 0
      %584 = vmatprep.subr.bf16.mxu0 0
      %585 = vmatpush1.bf16.msra.mxu0 0
      %586 = vmatprep.subr.bf16.mxu0 0
      %587 = vmatpush1.bf16.msra.mxu0 0
      %588 = vmatprep.subr.bf16.mxu0 0
      %589 = vmatpush1.bf16.msra.mxu0 0
      %590 = vmatprep.mubr.bf16.mxu0 0
      %591 = vmatmul.mubr.bf16.gmra.mrb[0].mxu0 %v511
      %v592 = vpop.f32.mrb[0].mxu0
      %v593 = vadd.f32 0.0, %v592
      %v594 = vpop.f32.mrb[0].mxu0
      %v595 = vpop.f32.mrb[0].mxu0
      %v596 = vadd.f32 0.0, %v595
      %v597 = vpop.f32.mrb[0].mxu0
      %598 = vmatprep.mubr.bf16.mxu0 0
      %599 = vmatmul.mubr.bf16.gmra.mrb[0].mxu0 %v514
      %v600 = vpop.f32.mrb[0].mxu0
      %v601 = vadd.f32 0.0, %v600
      %v602 = vpop.f32.mrb[0].mxu0
      %v603 = vpop.f32.mrb[0].mxu0
      %v604 = vadd.f32 0.0, %v603
      %v605 = vpop.f32.mrb[0].mxu0
      %606 = vmatprep.mubr.bf16.mxu0 0
      %607 = vmatmul.mubr.bf16.gmra.mrb[0].mxu0 %v517
      %v608 = vpop.f32.mrb[0].mxu0
      %v609 = vadd.f32 0.0, %v608
      %v610 = vpop.f32.mrb[0].mxu0
      %v611 = vpop.f32.mrb[0].mxu0
      %v612 = vadd.f32 0.0, %v611
      %v613 = vpop.f32.mrb[0].mxu0
      %614 = vmatprep.mubr.bf16.mxu0 0
      %615 = vmatmul.mubr.bf16.gmra.mrb[0].mxu0 %v520
      %v616 = vpop.f32.mrb[0].mxu0
      %v617 = vadd.f32 0.0, %v616
      %v618 = vpop.f32.mrb[0].mxu0
      %v619 = vpop.f32.mrb[0].mxu0
      %v620 = vadd.f32 0.0, %v619
      %v621 = vpop.f32.mrb[0].mxu0
      %622 = vmatprep.mubr.bf16.mxu0 0
      %623 = vmatmul.mubr.bf16.gmra.mrb[0].mxu0 %v523
      %v624 = vpop.f32.mrb[0].mxu0
      %v625 = vadd.f32 0.0, %v624
      %v626 = vpop.f32.mrb[0].mxu0
      %v627 = vpop.f32.mrb[0].mxu0
      %v628 = vadd.f32 0.0, %v627
      %v629 = vpop.f32.mrb[0].mxu0
      %630 = vmatprep.mubr.bf16.mxu0 0
      %631 = vmatmul.mubr.bf16.gmra.mrb[0].mxu0 %v526
      %v632 = vpop.f32.mrb[0].mxu0
      %v633 = vadd.f32 0.0, %v632
      %v634 = vpop.f32.mrb[0].mxu0
      %v635 = vpop.f32.mrb[0].mxu0
      %v636 = vadd.f32 0.0, %v635
      %v637 = vpop.f32.mrb[0].mxu0
      %638 = vmatprep.mubr.bf16.mxu0 0
      %639 = vmatmul.mubr.bf16.gmra.mrb[0].mxu0 %v529
      %v640 = vpop.f32.mrb[0].mxu0
      %v641 = vadd.f32 0.0, %v640
      %v642 = vpop.f32.mrb[0].mxu0
      %v643 = vpop.f32.mrb[0].mxu0
      %v644 = vadd.f32 0.0, %v643
      %v645 = vpop.f32.mrb[0].mxu0
      %646 = vmatprep.mubr.bf16.mxu0 0
      %647 = vmatmul.mubr.bf16.gmra.mrb[0].mxu0 %v532
      %v648 = vpop.f32.mrb[0].mxu0
      %v649 = vadd.f32 0.0, %v648
      %v650 = vpop.f32.mrb[0].mxu0
      %v651 = vpop.f32.mrb[0].mxu0
      %v652 = vadd.f32 0.0, %v651
      %v653 = vpop.f32.mrb[0].mxu0
      %654 = vmatprep.mubr.bf16.mxu0 0
      %655 = vmatmul.mubr.bf16.gmra.mrb[0].mxu0 %v535
      %v656 = vpop.f32.mrb[0].mxu0
      %v657 = vadd.f32 0.0, %v656
      %v658 = vpop.f32.mrb[0].mxu0
      %v659 = vpop.f32.mrb[0].mxu0
      %v660 = vadd.f32 0.0, %v659
      %v661 = vpop.f32.mrb[0].mxu0
      %662 = vmatprep.mubr.bf16.mxu0 0
      %663 = vmatmul.mubr.bf16.gmra.mrb[0].mxu0 %v538
      %v664 = vpop.f32.mrb[0].mxu0
      %v665 = vadd.f32 0.0, %v664
      %v666 = vpop.f32.mrb[0].mxu0
      %v667 = vpop.f32.mrb[0].mxu0
      %v668 = vadd.f32 0.0, %v667
      %v669 = vpop.f32.mrb[0].mxu0
      %670 = vmatprep.mubr.bf16.mxu0 0
      %671 = vmatmul.mubr.bf16.gmra.mrb[0].mxu0 %v541
      %v672 = vpop.f32.mrb[0].mxu0
      %v673 = vadd.f32 0.0, %v672
      %v674 = vpop.f32.mrb[0].mxu0
      %v675 = vpop.f32.mrb[0].mxu0
      %v676 = vadd.f32 0.0, %v675
      %v677 = vpop.f32.mrb[0].mxu0
      %678 = vmatprep.mubr.bf16.mxu0 0
      %679 = vmatmul.mubr.bf16.gmra.mrb[0].mxu0 %v544
      %v680 = vpop.f32.mrb[0].mxu0
      %v681 = vadd.f32 0.0, %v680
      %v682 = vpop.f32.mrb[0].mxu0
      %v683 = vpop.f32.mrb[0].mxu0
      %v684 = vadd.f32 0.0, %v683
      %v685 = vpop.f32.mrb[0].mxu0
      %686 = vmatprep.mubr.bf16.mxu0 0
      %687 = vmatmul.mubr.bf16.gmra.mrb[0].mxu0 %v547
      %v688 = vpop.f32.mrb[0].mxu0
      %v689 = vadd.f32 0.0, %v688
      %v690 = vpop.f32.mrb[0].mxu0
      %v691 = vpop.f32.mrb[0].mxu0
      %v692 = vadd.f32 0.0, %v691
      %v693 = vpop.f32.mrb[0].mxu0
      %694 = vmatprep.mubr.bf16.mxu0 0
      %695 = vmatmul.mubr.bf16.gmra.mrb[0].mxu0 %v550
      %v696 = vpop.f32.mrb[0].mxu0
      %v697 = vadd.f32 0.0, %v696
      %v698 = vpop.f32.mrb[0].mxu0
      %v699 = vpop.f32.mrb[0].mxu0
      %v700 = vadd.f32 0.0, %v699
      %v701 = vpop.f32.mrb[0].mxu0
      %702 = vmatprep.mubr.bf16.mxu0 0
      %703 = vmatmul.mubr.bf16.gmra.mrb[0].mxu0 %v553
      %v704 = vpop.f32.mrb[0].mxu0
      %v705 = vadd.f32 0.0, %v704
      %v706 = vpop.f32.mrb[0].mxu0
      %v707 = vpop.f32.mrb[0].mxu0
      %v708 = vadd.f32 0.0, %v707
      %v709 = vpop.f32.mrb[0].mxu0
      %710 = vmatprep.mubr.bf16.mxu0 0
      %711 = vmatmul.mubr.bf16.gmra.mrb[0].mxu0 %v556
      %v712 = vpop.f32.mrb[0].mxu0
      %v713 = vadd.f32 0.0, %v712
      %v714 = vpop.f32.mrb[0].mxu0
      %v715 = vpop.f32.mrb[0].mxu0
      %v716 = vadd.f32 0.0, %v715
      %v717 = vpop.f32.mrb[0].mxu0
      %718 = vdwg.mxu0
      %v721 = vunpack.c.l.b16 %v354
      %v722 = vunpack.c.l.b16 %v355
      %v723 = vpack.c.b16 %v722, %v721
      %v732 = vunpack.c.l.b16 %v468
      %v733 = vunpack.c.l.b16 %v469
      %v734 = vunpack.c.l.b16 %v470
      %v735 = vunpack.c.l.b16 %v471
      %v736 = vunpack.c.l.b16 %v472
      %v737 = vunpack.c.l.b16 %v473
      %v738 = vunpack.c.l.b16 %v474
      %v739 = vunpack.c.l.b16 %v475
      %v740 = vpack.c.b16 %v733, %v732
      %v741 = vpack.c.b16 %v735, %v734
      %v742 = vpack.c.b16 %v737, %v736
      %v743 = vpack.c.b16 %v739, %v738
      %v749 = vsel %vm509, %v723, 0
      %751 = vmatprep.subr.bf16.mxu0 0
      %752 = vmatpush1.bf16.msra.mxu0 %v740
      %753 = vmatprep.subr.bf16.mxu0 0
      %754 = vmatpush1.bf16.msra.mxu0 %v741
      %755 = vmatprep.subr.bf16.mxu0 0
      %756 = vmatpush1.bf16.msra.mxu0 %v742
      %757 = vmatprep.subr.bf16.mxu0 0
      %758 = vmatpush1.bf16.msra.mxu0 %v743
      %759 = vmatprep.subr.bf16.mxu0 0
      %760 = vmatpush1.bf16.msra.mxu0 0
      %761 = vmatprep.subr.bf16.mxu0 0
      %762 = vmatpush1.bf16.msra.mxu0 0
      %763 = vmatprep.subr.bf16.mxu0 0
      %764 = vmatpush1.bf16.msra.mxu0 0
      %765 = vmatprep.subr.bf16.mxu0 0
      %766 = vmatpush1.bf16.msra.mxu0 0
      %767 = vmatprep.subr.bf16.mxu0 0
      %768 = vmatpush1.bf16.msra.mxu0 0
      %769 = vmatprep.subr.bf16.mxu0 0
      %770 = vmatpush1.bf16.msra.mxu0 0
      %771 = vmatprep.subr.bf16.mxu0 0
      %772 = vmatpush1.bf16.msra.mxu0 0
      %773 = vmatprep.subr.bf16.mxu0 0
      %774 = vmatpush1.bf16.msra.mxu0 0
      %775 = vmatprep.subr.bf16.mxu0 0
      %776 = vmatpush1.bf16.msra.mxu0 0
      %777 = vmatprep.subr.bf16.mxu0 0
      %778 = vmatpush1.bf16.msra.mxu0 0
      %779 = vmatprep.subr.bf16.mxu0 0
      %780 = vmatpush1.bf16.msra.mxu0 0
      %781 = vmatprep.subr.bf16.mxu0 0
      %782 = vmatpush1.bf16.msra.mxu0 0
      %783 = vmatprep.mubr.bf16.mxu0 0
      %784 = vmatmul.mubr.bf16.gmra.mrb[0].mxu0 %v749
      %v785 = vpop.f32.mrb[0].mxu0
      %v786 = vadd.f32 %v593, %v785
      %v787 = vpop.f32.mrb[0].mxu0
      %v788 = vpop.f32.mrb[0].mxu0
      %v789 = vadd.f32 %v596, %v788
      %v790 = vpop.f32.mrb[0].mxu0
      %791 = vmatprep.mubr.bf16.mxu0 0
      %792 = vmatmul.mubr.bf16.gmra.mrb[0].mxu0 %v511
      %v793 = vpop.f32.mrb[0].mxu0
      %v794 = vadd.f32 %v601, %v793
      %v795 = vpop.f32.mrb[0].mxu0
      %v796 = vpop.f32.mrb[0].mxu0
      %v797 = vadd.f32 %v604, %v796
      %v798 = vpop.f32.mrb[0].mxu0
      %799 = vmatprep.mubr.bf16.mxu0 0
      %800 = vmatmul.mubr.bf16.gmra.mrb[0].mxu0 %v514
      %v801 = vpop.f32.mrb[0].mxu0
      %v802 = vadd.f32 %v609, %v801
      %v803 = vpop.f32.mrb[0].mxu0
      %v804 = vpop.f32.mrb[0].mxu0
      %v805 = vadd.f32 %v612, %v804
      %v806 = vpop.f32.mrb[0].mxu0
      %807 = vmatprep.mubr.bf16.mxu0 0
      %808 = vmatmul.mubr.bf16.gmra.mrb[0].mxu0 %v517
      %v809 = vpop.f32.mrb[0].mxu0
      %v810 = vadd.f32 %v617, %v809
      %v811 = vpop.f32.mrb[0].mxu0
      %v812 = vpop.f32.mrb[0].mxu0
      %v813 = vadd.f32 %v620, %v812
      %v814 = vpop.f32.mrb[0].mxu0
      %815 = vmatprep.mubr.bf16.mxu0 0
      %816 = vmatmul.mubr.bf16.gmra.mrb[0].mxu0 %v520
      %v817 = vpop.f32.mrb[0].mxu0
      %v818 = vadd.f32 %v625, %v817
      %v819 = vpop.f32.mrb[0].mxu0
      %v820 = vpop.f32.mrb[0].mxu0
      %v821 = vadd.f32 %v628, %v820
      %v822 = vpop.f32.mrb[0].mxu0
      %823 = vmatprep.mubr.bf16.mxu0 0
      %824 = vmatmul.mubr.bf16.gmra.mrb[0].mxu0 %v523
      %v825 = vpop.f32.mrb[0].mxu0
      %v826 = vadd.f32 %v633, %v825
      %v827 = vpop.f32.mrb[0].mxu0
      %v828 = vpop.f32.mrb[0].mxu0
      %v829 = vadd.f32 %v636, %v828
      %v830 = vpop.f32.mrb[0].mxu0
      %831 = vmatprep.mubr.bf16.mxu0 0
      %832 = vmatmul.mubr.bf16.gmra.mrb[0].mxu0 %v526
      %v833 = vpop.f32.mrb[0].mxu0
      %v834 = vadd.f32 %v641, %v833
      %v835 = vpop.f32.mrb[0].mxu0
      %v836 = vpop.f32.mrb[0].mxu0
      %v837 = vadd.f32 %v644, %v836
      %v838 = vpop.f32.mrb[0].mxu0
      %839 = vmatprep.mubr.bf16.mxu0 0
      %840 = vmatmul.mubr.bf16.gmra.mrb[0].mxu0 %v529
      %v841 = vpop.f32.mrb[0].mxu0
      %v842 = vadd.f32 %v649, %v841
      %v843 = vpop.f32.mrb[0].mxu0
      %v844 = vpop.f32.mrb[0].mxu0
      %v845 = vadd.f32 %v652, %v844
      %v846 = vpop.f32.mrb[0].mxu0
      %847 = vmatprep.mubr.bf16.mxu0 0
      %848 = vmatmul.mubr.bf16.gmra.mrb[0].mxu0 %v532
      %v849 = vpop.f32.mrb[0].mxu0
      %v850 = vadd.f32 %v657, %v849
      %v851 = vpop.f32.mrb[0].mxu0
      %v852 = vpop.f32.mrb[0].mxu0
      %v853 = vadd.f32 %v660, %v852
      %v854 = vpop.f32.mrb[0].mxu0
      %855 = vmatprep.mubr.bf16.mxu0 0
      %856 = vmatmul.mubr.bf16.gmra.mrb[0].mxu0 %v535
      %v857 = vpop.f32.mrb[0].mxu0
      %v858 = vadd.f32 %v665, %v857
      %v859 = vpop.f32.mrb[0].mxu0
      %v860 = vpop.f32.mrb[0].mxu0
      %v861 = vadd.f32 %v668, %v860
      %v862 = vpop.f32.mrb[0].mxu0
      %863 = vmatprep.mubr.bf16.mxu0 0
      %864 = vmatmul.mubr.bf16.gmra.mrb[0].mxu0 %v538
      %v865 = vpop.f32.mrb[0].mxu0
      %v866 = vadd.f32 %v673, %v865
      %v867 = vpop.f32.mrb[0].mxu0
      %v868 = vpop.f32.mrb[0].mxu0
      %v869 = vadd.f32 %v676, %v868
      %v870 = vpop.f32.mrb[0].mxu0
      %871 = vmatprep.mubr.bf16.mxu0 0
      %872 = vmatmul.mubr.bf16.gmra.mrb[0].mxu0 %v541
      %v873 = vpop.f32.mrb[0].mxu0
      %v874 = vadd.f32 %v681, %v873
      %v875 = vpop.f32.mrb[0].mxu0
      %v876 = vpop.f32.mrb[0].mxu0
      %v877 = vadd.f32 %v684, %v876
      %v878 = vpop.f32.mrb[0].mxu0
      %879 = vmatprep.mubr.bf16.mxu0 0
      %880 = vmatmul.mubr.bf16.gmra.mrb[0].mxu0 %v544
      %v881 = vpop.f32.mrb[0].mxu0
      %v882 = vadd.f32 %v689, %v881
      %v883 = vpop.f32.mrb[0].mxu0
      %v884 = vpop.f32.mrb[0].mxu0
      %v885 = vadd.f32 %v692, %v884
      %v886 = vpop.f32.mrb[0].mxu0
      %887 = vmatprep.mubr.bf16.mxu0 0
      %888 = vmatmul.mubr.bf16.gmra.mrb[0].mxu0 %v547
      %v889 = vpop.f32.mrb[0].mxu0
      %v890 = vadd.f32 %v697, %v889
      %v891 = vpop.f32.mrb[0].mxu0
      %v892 = vpop.f32.mrb[0].mxu0
      %v893 = vadd.f32 %v700, %v892
      %v894 = vpop.f32.mrb[0].mxu0
      %895 = vmatprep.mubr.bf16.mxu0 0
      %896 = vmatmul.mubr.bf16.gmra.mrb[0].mxu0 %v550
      %v897 = vpop.f32.mrb[0].mxu0
      %v898 = vadd.f32 %v705, %v897
      %v899 = vpop.f32.mrb[0].mxu0
      %v900 = vpop.f32.mrb[0].mxu0
      %v901 = vadd.f32 %v708, %v900
      %v902 = vpop.f32.mrb[0].mxu0
      %903 = vmatprep.mubr.bf16.mxu0 0
      %904 = vmatmul.mubr.bf16.gmra.mrb[0].mxu0 %v553
      %v905 = vpop.f32.mrb[0].mxu0
      %v906 = vadd.f32 %v713, %v905
      %v907 = vpop.f32.mrb[0].mxu0
      %v908 = vpop.f32.mrb[0].mxu0
      %v909 = vadd.f32 %v716, %v908
      %v910 = vpop.f32.mrb[0].mxu0
      %911 = vdwg.mxu0
      %v912 = vld [vmem:[%s339] sm:$0x1]
      %v914 = vlaneseq
      %v915 = vshrl.u32 %v914, 7
      %v916 = vsub.s32 0, %v915
      %v917 = vrot.slane %v912, %v916
      %v919 = vadd.f32 %v786, %v917
      %v920 = vadd.f32 %v789, %v917
      %v921 = vadd.f32 %v794, %v917
      %v922 = vadd.f32 %v797, %v917
      %v923 = vadd.f32 %v802, %v917
      %v924 = vadd.f32 %v805, %v917
      %v925 = vadd.f32 %v810, %v917
      %v926 = vadd.f32 %v813, %v917
      %v927 = vadd.f32 %v818, %v917
      %v928 = vadd.f32 %v821, %v917
      %v929 = vadd.f32 %v826, %v917
      %v930 = vadd.f32 %v829, %v917
      %v931 = vadd.f32 %v834, %v917
      %v932 = vadd.f32 %v837, %v917
      %v933 = vadd.f32 %v842, %v917
      %v934 = vadd.f32 %v845, %v917
      %v935 = vadd.f32 %v850, %v917
      %v936 = vadd.f32 %v853, %v917
      %v937 = vadd.f32 %v858, %v917
      %v938 = vadd.f32 %v861, %v917
      %v939 = vadd.f32 %v866, %v917
      %v940 = vadd.f32 %v869, %v917
      %v941 = vadd.f32 %v874, %v917
      %v942 = vadd.f32 %v877, %v917
      %v943 = vadd.f32 %v882, %v917
      %v944 = vadd.f32 %v885, %v917
      %v945 = vadd.f32 %v890, %v917
      %v946 = vadd.f32 %v893, %v917
      %v947 = vadd.f32 %v898, %v917
      %v948 = vadd.f32 %v901, %v917
      %v949 = vadd.f32 %v906, %v917
      %v950 = vadd.f32 %v909, %v917
      %vm951 = vcmp.ge.f32.partialorder %v919, 0.0
      %vm952 = vcmp.ge.f32.partialorder %v920, 0.0
      %vm953 = vcmp.ge.f32.partialorder %v921, 0.0
      %vm954 = vcmp.ge.f32.partialorder %v922, 0.0
      %vm955 = vcmp.ge.f32.partialorder %v923, 0.0
      %vm956 = vcmp.ge.f32.partialorder %v924, 0.0
      %vm957 = vcmp.ge.f32.partialorder %v925, 0.0
      %vm958 = vcmp.ge.f32.partialorder %v926, 0.0
      %vm959 = vcmp.ge.f32.partialorder %v927, 0.0
      %vm960 = vcmp.ge.f32.partialorder %v928, 0.0
      %vm961 = vcmp.ge.f32.partialorder %v929, 0.0
      %vm962 = vcmp.ge.f32.partialorder %v930, 0.0
      %vm963 = vcmp.ge.f32.partialorder %v931, 0.0
      %vm964 = vcmp.ge.f32.partialorder %v932, 0.0
      %vm965 = vcmp.ge.f32.partialorder %v933, 0.0
      %vm966 = vcmp.ge.f32.partialorder %v934, 0.0
      %vm967 = vcmp.ge.f32.partialorder %v935, 0.0
      %vm968 = vcmp.ge.f32.partialorder %v936, 0.0
      %vm969 = vcmp.ge.f32.partialorder %v937, 0.0
      %vm970 = vcmp.ge.f32.partialorder %v938, 0.0
      %vm971 = vcmp.ge.f32.partialorder %v939, 0.0
      %vm972 = vcmp.ge.f32.partialorder %v940, 0.0
      %vm973 = vcmp.ge.f32.partialorder %v941, 0.0
      %vm974 = vcmp.ge.f32.partialorder %v942, 0.0
      %vm975 = vcmp.ge.f32.partialorder %v943, 0.0
      %vm976 = vcmp.ge.f32.partialorder %v944, 0.0
      %vm977 = vcmp.ge.f32.partialorder %v945, 0.0
      %vm978 = vcmp.ge.f32.partialorder %v946, 0.0
      %vm979 = vcmp.ge.f32.partialorder %v947, 0.0
      %vm980 = vcmp.ge.f32.partialorder %v948, 0.0
      %vm981 = vcmp.ge.f32.partialorder %v949, 0.0
      %vm982 = vcmp.ge.f32.partialorder %v950, 0.0
      %v983 = vmul.f32 %v919, 0.01
      %v984 = vmul.f32 %v920, 0.01
      %v985 = vmul.f32 %v921, 0.01
      %v986 = vmul.f32 %v922, 0.01
      %v987 = vmul.f32 %v923, 0.01
      %v988 = vmul.f32 %v924, 0.01
      %v989 = vmul.f32 %v925, 0.01
      %v990 = vmul.f32 %v926, 0.01
      %v991 = vmul.f32 %v927, 0.01
      %v992 = vmul.f32 %v928, 0.01
      %v993 = vmul.f32 %v929, 0.01
      %v994 = vmul.f32 %v930, 0.01
      %v995 = vmul.f32 %v931, 0.01
      %v996 = vmul.f32 %v932, 0.01
      %v997 = vmul.f32 %v933, 0.01
      %v998 = vmul.f32 %v934, 0.01
      %v999 = vmul.f32 %v935, 0.01
      %v1000 = vmul.f32 %v936, 0.01
      %v1001 = vmul.f32 %v937, 0.01
      %v1002 = vmul.f32 %v938, 0.01
      %v1003 = vmul.f32 %v939, 0.01
      %v1004 = vmul.f32 %v940, 0.01
      %v1005 = vmul.f32 %v941, 0.01
      %v1006 = vmul.f32 %v942, 0.01
      %v1007 = vmul.f32 %v943, 0.01
      %v1008 = vmul.f32 %v944, 0.01
      %v1009 = vmul.f32 %v945, 0.01
      %v1010 = vmul.f32 %v946, 0.01
      %v1011 = vmul.f32 %v947, 0.01
      %v1012 = vmul.f32 %v948, 0.01
      %v1013 = vmul.f32 %v949, 0.01
      %v1014 = vmul.f32 %v950, 0.01
      %v1015 = vsel %vm951, %v919, %v983
      %v1016 = vsel %vm952, %v920, %v984
      %v1017 = vsel %vm953, %v921, %v985
      %v1018 = vsel %vm954, %v922, %v986
      %v1019 = vsel %vm955, %v923, %v987
      %v1020 = vsel %vm956, %v924, %v988
      %v1021 = vsel %vm957, %v925, %v989
      %v1022 = vsel %vm958, %v926, %v990
      %v1023 = vsel %vm959, %v927, %v991
      %v1024 = vsel %vm960, %v928, %v992
      %v1025 = vsel %vm961, %v929, %v993
      %v1026 = vsel %vm962, %v930, %v994
      %v1027 = vsel %vm963, %v931, %v995
      %v1028 = vsel %vm964, %v932, %v996
      %v1029 = vsel %vm965, %v933, %v997
      %v1030 = vsel %vm966, %v934, %v998
      %v1031 = vsel %vm967, %v935, %v999
      %v1032 = vsel %vm968, %v936, %v1000
      %v1033 = vsel %vm969, %v937, %v1001
      %v1034 = vsel %vm970, %v938, %v1002
      %v1035 = vsel %vm971, %v939, %v1003
      %v1036 = vsel %vm972, %v940, %v1004
      %v1037 = vsel %vm973, %v941, %v1005
      %v1038 = vsel %vm974, %v942, %v1006
      %v1039 = vsel %vm975, %v943, %v1007
      %v1040 = vsel %vm976, %v944, %v1008
      %v1041 = vsel %vm977, %v945, %v1009
      %v1042 = vsel %vm978, %v946, %v1010
      %v1043 = vsel %vm979, %v947, %v1011
      %v1044 = vsel %vm980, %v948, %v1012
      %v1045 = vsel %vm981, %v949, %v1013
      %v1046 = vsel %vm982, %v950, %v1014
      %v1047 = vpack.c.bf16 %v1016, %v1015
      %v1048 = vpack.c.bf16 %v1018, %v1017
      %v1049 = vpack.c.bf16 %v1020, %v1019
      %v1050 = vpack.c.bf16 %v1022, %v1021
      %v1051 = vpack.c.bf16 %v1024, %v1023
      %v1052 = vpack.c.bf16 %v1026, %v1025
      %v1053 = vpack.c.bf16 %v1028, %v1027
      %v1054 = vpack.c.bf16 %v1030, %v1029
      %v1055 = vpack.c.bf16 %v1032, %v1031
      %v1056 = vpack.c.bf16 %v1034, %v1033
      %v1057 = vpack.c.bf16 %v1036, %v1035
      %v1058 = vpack.c.bf16 %v1038, %v1037
      %v1059 = vpack.c.bf16 %v1040, %v1039
      %v1060 = vpack.c.bf16 %v1042, %v1041
      %v1061 = vpack.c.bf16 %v1044, %v1043
      %v1062 = vpack.c.bf16 %v1046, %v1045
      %v1079 = vunpack.c.l.b16 %v1047
      %v1080 = vunpack.c.h.b16 %v1047
      %v1081 = vunpack.c.l.b16 %v1048
      %v1082 = vunpack.c.h.b16 %v1048
      %v1083 = vunpack.c.l.b16 %v1049
      %v1084 = vunpack.c.h.b16 %v1049
      %v1085 = vunpack.c.l.b16 %v1050
      %v1086 = vunpack.c.h.b16 %v1050
      %v1087 = vunpack.c.l.b16 %v1051
      %v1088 = vunpack.c.h.b16 %v1051
      %v1089 = vunpack.c.l.b16 %v1052
      %v1090 = vunpack.c.h.b16 %v1052
      %v1091 = vunpack.c.l.b16 %v1053
      %v1092 = vunpack.c.h.b16 %v1053
      %v1093 = vunpack.c.l.b16 %v1054
      %v1094 = vunpack.c.h.b16 %v1054
      %v1095 = vunpack.c.l.b16 %v1055
      %v1096 = vunpack.c.h.b16 %v1055
      %v1097 = vunpack.c.l.b16 %v1056
      %v1098 = vunpack.c.h.b16 %v1056
      %v1099 = vunpack.c.l.b16 %v1057
      %v1100 = vunpack.c.h.b16 %v1057
      %v1101 = vunpack.c.l.b16 %v1058
      %v1102 = vunpack.c.h.b16 %v1058
      %v1103 = vunpack.c.l.b16 %v1059
      %v1104 = vunpack.c.h.b16 %v1059
      %v1105 = vunpack.c.l.b16 %v1060
      %v1106 = vunpack.c.h.b16 %v1060
      %v1107 = vunpack.c.l.b16 %v1061
      %v1108 = vunpack.c.h.b16 %v1061
      %v1109 = vunpack.c.l.b16 %v1062
      %v1110 = vunpack.c.h.b16 %v1062
      %v1111 = vpack.c.b16 %v1079, %v1079
      %v1112 = vpack.c.b16 %v1080, %v1080
      %v1113 = vpack.c.b16 %v1081, %v1081
      %v1114 = vpack.c.b16 %v1082, %v1082
      %v1115 = vpack.c.b16 %v1083, %v1083
      %v1116 = vpack.c.b16 %v1084, %v1084
      %v1117 = vpack.c.b16 %v1085, %v1085
      %v1118 = vpack.c.b16 %v1086, %v1086
      %v1119 = vpack.c.b16 %v1087, %v1087
      %v1120 = vpack.c.b16 %v1088, %v1088
      %v1121 = vpack.c.b16 %v1089, %v1089
      %v1122 = vpack.c.b16 %v1090, %v1090
      %v1123 = vpack.c.b16 %v1091, %v1091
      %v1124 = vpack.c.b16 %v1092, %v1092
      %v1125 = vpack.c.b16 %v1093, %v1093
      %v1126 = vpack.c.b16 %v1094, %v1094
      %v1127 = vpack.c.b16 %v1095, %v1095
      %v1128 = vpack.c.b16 %v1096, %v1096
      %v1129 = vpack.c.b16 %v1097, %v1097
      %v1130 = vpack.c.b16 %v1098, %v1098
      %v1131 = vpack.c.b16 %v1099, %v1099
      %v1132 = vpack.c.b16 %v1100, %v1100
      %v1133 = vpack.c.b16 %v1101, %v1101
      %v1134 = vpack.c.b16 %v1102, %v1102
      %v1135 = vpack.c.b16 %v1103, %v1103
      %v1136 = vpack.c.b16 %v1104, %v1104
      %v1137 = vpack.c.b16 %v1105, %v1105
      %v1138 = vpack.c.b16 %v1106, %v1106
      %v1139 = vpack.c.b16 %v1107, %v1107
      %v1140 = vpack.c.b16 %v1108, %v1108
      %v1141 = vpack.c.b16 %v1109, %v1109
      %v1142 = vpack.c.b16 %v1110, %v1110
      %vm1175 = vcmask 125952
      %1176 = vst.msk [vmem:[%s351] sm:$0xf] %vm1175, %v1111
      %1177 = vst.msk [vmem:[%s351 + $0x4] sm:$0xf] %vm1175, %v1112
      %1178 = vst.msk [vmem:[%s351 + $0x8] sm:$0xf] %vm1175, %v1113
      %1179 = vst.msk [vmem:[%s351 + $0xc] sm:$0xf] %vm1175, %v1114
      %1180 = vst.msk [vmem:[%s351 + $0x10] sm:$0xf] %vm1175, %v1115
      %1181 = vst.msk [vmem:[%s351 + $0x14] sm:$0xf] %vm1175, %v1116
      %1182 = vst.msk [vmem:[%s351 + $0x18] sm:$0xf] %vm1175, %v1117
      %1183 = vst.msk [vmem:[%s351 + $0x1c] sm:$0xf] %vm1175, %v1118
      %1184 = vst.msk [vmem:[%s351 + $0x20] sm:$0xf] %vm1175, %v1119
      %1185 = vst.msk [vmem:[%s351 + $0x24] sm:$0xf] %vm1175, %v1120
      %1186 = vst.msk [vmem:[%s351 + $0x28] sm:$0xf] %vm1175, %v1121
      %1187 = vst.msk [vmem:[%s351 + $0x2c] sm:$0xf] %vm1175, %v1122
      %1188 = vst.msk [vmem:[%s351 + $0x30] sm:$0xf] %vm1175, %v1123
      %1189 = vst.msk [vmem:[%s351 + $0x34] sm:$0xf] %vm1175, %v1124
      %1190 = vst.msk [vmem:[%s351 + $0x38] sm:$0xf] %vm1175, %v1125
      %1191 = vst.msk [vmem:[%s351 + $0x3c] sm:$0xf] %vm1175, %v1126
      %1192 = vst.msk [vmem:[%s351 + $0x40] sm:$0xf] %vm1175, %v1127
      %1193 = vst.msk [vmem:[%s351 + $0x44] sm:$0xf] %vm1175, %v1128
      %1194 = vst.msk [vmem:[%s351 + $0x48] sm:$0xf] %vm1175, %v1129
      %1195 = vst.msk [vmem:[%s351 + $0x4c] sm:$0xf] %vm1175, %v1130
      %1196 = vst.msk [vmem:[%s351 + $0x50] sm:$0xf] %vm1175, %v1131
      %1197 = vst.msk [vmem:[%s351 + $0x54] sm:$0xf] %vm1175, %v1132
      %1198 = vst.msk [vmem:[%s351 + $0x58] sm:$0xf] %vm1175, %v1133
      %1199 = vst.msk [vmem:[%s351 + $0x5c] sm:$0xf] %vm1175, %v1134
      %1200 = vst.msk [vmem:[%s351 + $0x60] sm:$0xf] %vm1175, %v1135
      %1201 = vst.msk [vmem:[%s351 + $0x64] sm:$0xf] %vm1175, %v1136
      %1202 = vst.msk [vmem:[%s351 + $0x68] sm:$0xf] %vm1175, %v1137
      %1203 = vst.msk [vmem:[%s351 + $0x6c] sm:$0xf] %vm1175, %v1138
      %1204 = vst.msk [vmem:[%s351 + $0x70] sm:$0xf] %vm1175, %v1139
      %1205 = vst.msk [vmem:[%s351 + $0x74] sm:$0xf] %vm1175, %v1140
      %1206 = vst.msk [vmem:[%s351 + $0x78] sm:$0xf] %vm1175, %v1141
      %1207 = vst.msk [vmem:[%s351 + $0x7c] sm:$0xf] %vm1175, %v1142
      %s1208 = smul.u32 32, %s22
      %p1209 = scmp.lt.s32.totalorder %s21, 1
      %s1210 = scalar_select %p1209, %s21, 1
      %p1211 = scmp.lt.s32.totalorder %s1208, 31
      %s1212 = scalar_select %p1211, %s1208, 31
      %p1213 = scmp.lt.s32.totalorder %s20, 0
      %s1214 = scalar_select %p1213, %s20, 0
      %s1215 = sadd.s32 %s1214, %s1212
      %s1216 = smul.addr %s1210, 32
      %s1217 = sadd.s32 %s1215, %s1216
      %s1218 = smul.addr %s1217, 4
      %s1219 = scalar_lea.vmem %s4, %s1218
      // Predicated region
      $region37: #{stargan_discriminator.3} parent=35 // pred_check
        %p1220 = pneg %p168
      $region38: #{stargan_discriminator.3} parent=35 // pred_check_branch
        %1222 = sbr.rel (%p1220) target = $region40
      $region39: #{stargan_discriminator.3} parent=35 // pred_region
        %s1223 = smul.u32 32, %s22
      $region40: #{stargan_discriminator.3} parent=35 // pred_fallthru
        _
    $region36: #{stargan_discriminator.3} parent=5 // pred_fallthru
      _
    %p1224 = scmp.le.s32.totalorder 2, %s10
    // Predicated region
    $region41: #{stargan_discriminator.3} parent=5 // pred_check
      %p1225 = pneg %p1224
    $region42: #{stargan_discriminator.3} parent=5 // pred_check_branch
      %1227 = sbr.rel (%p1225) target = $region44
    $region43: #{stargan_discriminator.3} parent=5 // pred_region
      %s1228 = ssub.s32 %s10, 2
      // Predicated region
      $region45: #{stargan_discriminator.3} parent=43 // pred_check
        %p1229 = pneg %p174
      $region46: #{stargan_discriminator.3} parent=43 // pred_check_branch
        %1231 = sbr.rel (%p1229) target = $region48
      $region47: #{stargan_discriminator.3} parent=43 // pred_region
        %s1232 = smul.u32 32, %s25
        %p1233 = scmp.lt.s32.totalorder %s24, 1
        %s1234 = scalar_select %p1233, %s24, 1
        %p1235 = scmp.lt.s32.totalorder %s1232, 31
        %s1236 = scalar_select %p1235, %s1232, 31
        %p1237 = scmp.lt.s32.totalorder %s23, 0
        %s1238 = scalar_select %p1237, %s23, 0
        %s1239 = sadd.s32 %s1238, %s1236
        %s1240 = smul.addr %s1234, 32
        %s1241 = sadd.s32 %s1239, %s1240
        %s1242 = smul.addr %s1241, 4
        %s1243 = scalar_lea.vmem %s4, %s1242
      $region48: #{stargan_discriminator.3} parent=43 // pred_fallthru
        _
    $region44: #{stargan_discriminator.3} parent=5 // pred_fallthru
      _
  $region6: #{stargan_discriminator.3} parent=0 // loop_footer
    %s14 = sadd.s32 1, %s10
  $region7: #{stargan_discriminator.3} parent=0 // loop_footer_branch
    %9 = sbr.rel target = $region3
  $region8: #{stargan_discriminator.3} parent=0 // loop_exit
    _

// kernel: stargan_discriminator.4
$region0: #{stargan_discriminator.4}
  #allocation0 [shape = 'u32[]', space=smem, size = 0x4, offset = 0x4, fixed_abs, tag = 'smem constant byte address 0x4 - core index']
  #allocation1 [shape = 'u32[144,128]{1,0:T(1,128)}', space=vmem, size = 0x12000, scoped, tag = 'internal scratch']
  %s0 = inlined_call_operand.vmem [shape: bf16[2,72,128], index: 0, kind: input, shape index: {}, may-alias: {0,1}]
  %s1 = inlined_call_operand.vmem [shape: bf16[2,72,128], index: 1, kind: input, shape index: {}, may-alias: {0,1}]
  %s2 = inlined_call_operand.vmem [shape: bf16[2,128,32], index: 2, kind: input, shape index: {}]
  %s3 = inlined_call_operand.vmem [shape: f32[1,32], index: 3, kind: input, shape index: {}]
  %s4 = inlined_call_operand.vmem [shape: bf16[2,64,32], index: 4, kind: output, shape index: {}]
  %s5 = sld [smem:[#allocation0]]
  $region49: #{stargan_discriminator.4} parent=0
    _
  %s7 = ssub.s32 1, %s5
  %s8 = scalar_select 0, %s7, %s5
  loop: start=0, step=1, limit=4
  $region2: #{stargan_discriminator.4} parent=0 // loop_pre_header
    _
  $region3: #{stargan_discriminator.4} parent=0 // loop_header
    %s10 = sphi 0, %s14
    %p11 = scmp.ge.s32.totalorder %s10, 4
    %s17 = sphi 0, %s36
    %s18 = sphi 0, %s32
    %s19 = sphi 0, %s28
    %s20 = sphi 0, %s17
    %s21 = sphi 0, %s18
    %s22 = sphi 0, %s19
    %s23 = sphi 0, %s20
    %s24 = sphi 0, %s21
    %s25 = sphi 0, %s22
    %s41 = sphi 0, %s43
    %s44 = sphi 0, %s41
    %s45 = sphi 0, %s44
    %s61 = sphi 0, %s45
    %s73 = sphi 0, %s75
    %s76 = sphi 0, %s73
    %s77 = sphi 0, %s76
    %s93 = sphi 0, %s77
    %s99 = sphi 0, %s101
    %s102 = sphi 0, %s99
    %s103 = sphi 0, %s102
    %s119 = sphi 0, %s103
    %s125 = sphi 0, %s127
    %s128 = sphi 0, %s125
    %s129 = sphi 0, %s128
    %s145 = sphi 0, %s129
    %s155 = sphi 0, %s157
    %s158 = sphi 0, %s155
    %s159 = sphi 0, %s158
    %s175 = sphi 0, %s159
  $region4: #{stargan_discriminator.4} parent=0 // loop_header_branch
    %13 = sbr.rel (%p11) target = $region8
  $region5: #{stargan_discriminator.4} parent=0 // loop_body
    %s15 = ssub.s32 %s10, 1
    %s16 = ssub.s32 %s10, 2
    %s26 = sadd.s32 1, %s19
    %p27 = scmp.ge.s32.totalorder %s26, 1
    %s28 = scalar_select %p27, 0, %s26
    %s29 = sadd.s32 1, %s18
    %s30 = scalar_select %p27, %s29, %s18
    %p31 = scmp.ge.s32.totalorder %s30, 2
    %s32 = scalar_select %p31, 0, %s30
    %s33 = sadd.s32 1, %s17
    %s34 = scalar_select %p31, %s33, %s17
    %p35 = scmp.ge.s32.totalorder %s34, 1
    %s36 = scalar_select %p35, 0, %s34
    %s37 = ssub.s32 %s18, %s32
    %s38 = ssub.s32 %s19, %s28
    %s39 = sor.u32 %s37, %s38
    %p40 = scmp.eq.s32.totalorder %s39, 0
    %s42 = sadd.s32 %s41, 1
    %s43 = scalar_select %p40, %s41, %s42
    %p46 = pneg %p40
    %p47 = scmp.eq.s32.totalorder %s10, 1
    %p48 = por %p46, %p47
    %p49 = scmp.ne.s32.totalorder %s41, %s44
    %p50 = scmp.eq.s32.totalorder %s10, 0
    %p51 = por %p49, %p50
    %p52 = scmp.ne.s32.totalorder %s41, %s44
    %p53 = scmp.eq.s32.totalorder %s15, 1
    %p54 = por %p52, %p53
    %p55 = scmp.ne.s32.totalorder %s44, %s45
    %p56 = scmp.eq.s32.totalorder %s15, 0
    %p57 = por %p55, %p56
    %p58 = scmp.ne.s32.totalorder %s44, %s45
    %p59 = scmp.eq.s32.totalorder %s16, 1
    %p60 = por %p58, %p59
    %p62 = scmp.ne.s32.totalorder %s45, %s61
    %p63 = scmp.eq.s32.totalorder %s16, 0
    %p64 = por %p62, %p63
    %s65 = sadd.s32 %s19, 1
    %s66 = smul.u32 %s65, 8
    %s67 = sadd.s32 %s28, 1
    %s68 = smul.u32 %s67, 8
    %s69 = ssub.s32 %s18, %s32
    %s70 = ssub.s32 %s66, %s68
    %s71 = sor.u32 %s69, %s70
    %p72 = scmp.eq.s32.totalorder %s71, 0
    %s74 = sadd.s32 %s73, 1
    %s75 = scalar_select %p72, %s73, %s74
    %p78 = pneg %p72
    %p79 = scmp.eq.s32.totalorder %s10, 1
    %p80 = por %p78, %p79
    %p81 = scmp.ne.s32.totalorder %s73, %s76
    %p82 = scmp.eq.s32.totalorder %s10, 0
    %p83 = por %p81, %p82
    %p84 = scmp.ne.s32.totalorder %s73, %s76
    %p85 = scmp.eq.s32.totalorder %s15, 1
    %p86 = por %p84, %p85
    %p87 = scmp.ne.s32.totalorder %s76, %s77
    %p88 = scmp.eq.s32.totalorder %s15, 0
    %p89 = por %p87, %p88
    %p90 = scmp.ne.s32.totalorder %s76, %s77
    %p91 = scmp.eq.s32.totalorder %s16, 1
    %p92 = por %p90, %p91
    %p94 = scmp.ne.s32.totalorder %s77, %s93
    %p95 = scmp.eq.s32.totalorder %s16, 0
    %p96 = por %p94, %p95
    %s97 = ssub.s32 %s17, %s36
    %p98 = scmp.eq.s32.totalorder %s97, 0
    %s100 = sadd.s32 %s99, 1
    %s101 = scalar_select %p98, %s99, %s100
    %p104 = pneg %p98
    %p105 = scmp.eq.s32.totalorder %s10, 1
    %p106 = por %p104, %p105
    %p107 = scmp.ne.s32.totalorder %s99, %s102
    %p108 = scmp.eq.s32.totalorder %s10, 0
    %p109 = por %p107, %p108
    %p110 = scmp.ne.s32.totalorder %s99, %s102
    %p111 = scmp.eq.s32.totalorder %s15, 1
    %p112 = por %p110, %p111
    %p113 = scmp.ne.s32.totalorder %s102, %s103
    %p114 = scmp.eq.s32.totalorder %s15, 0
    %p115 = por %p113, %p114
    %p116 = scmp.ne.s32.totalorder %s102, %s103
    %p117 = scmp.eq.s32.totalorder %s16, 1
    %p118 = por %p116, %p117
    %p120 = scmp.ne.s32.totalorder %s103, %s119
    %p121 = scmp.eq.s32.totalorder %s16, 0
    %p122 = por %p120, %p121
    %s123 = ssub.s32 %s17, %s36
    %p124 = scmp.eq.s32.totalorder %s123, 0
    %s126 = sadd.s32 %s125, 1
    %s127 = scalar_select %p124, %s125, %s126
    %p130 = pneg %p124
    %p131 = scmp.eq.s32.totalorder %s10, 1
    %p132 = por %p130, %p131
    %p133 = scmp.ne.s32.totalorder %s125, %s128
    %p134 = scmp.eq.s32.totalorder %s10, 0
    %p135 = por %p133, %p134
    %p136 = scmp.ne.s32.totalorder %s125, %s128
    %p137 = scmp.eq.s32.totalorder %s15, 1
    %p138 = por %p136, %p137
    %p139 = scmp.ne.s32.totalorder %s128, %s129
    %p140 = scmp.eq.s32.totalorder %s15, 0
    %p141 = por %p139, %p140
    %p142 = scmp.ne.s32.totalorder %s128, %s129
    %p143 = scmp.eq.s32.totalorder %s16, 1
    %p144 = por %p142, %p143
    %p146 = scmp.ne.s32.totalorder %s129, %s145
    %p147 = scmp.eq.s32.totalorder %s16, 0
    %p148 = por %p146, %p147
    %s149 = ssub.s32 %s18, %s32
    %s150 = ssub.s32 %s19, %s28
    %s151 = sor.u32 %s149, %s150
    %s152 = ssub.s32 %s17, %s36
    %s153 = sor.u32 %s151, %s152
    %p154 = scmp.eq.s32.totalorder %s153, 0
    %s156 = sadd.s32 %s155, 1
    %s157 = scalar_select %p154, %s155, %s156
    %p160 = pneg %p154
    %p161 = scmp.eq.s32.totalorder %s10, 1
    %p162 = por %p160, %p161
    %p163 = scmp.ne.s32.totalorder %s155, %s158
    %p164 = scmp.eq.s32.totalorder %s10, 0
    %p165 = por %p163, %p164
    %p166 = scmp.ne.s32.totalorder %s155, %s158
    %p167 = scmp.eq.s32.totalorder %s15, 1
    %p168 = por %p166, %p167
    %p169 = scmp.ne.s32.totalorder %s158, %s159
    %p170 = scmp.eq.s32.totalorder %s15, 0
    %p171 = por %p169, %p170
    %p172 = scmp.ne.s32.totalorder %s158, %s159
    %p173 = scmp.eq.s32.totalorder %s16, 1
    %p174 = por %p172, %p173
    %p176 = scmp.ne.s32.totalorder %s159, %s175
    %p177 = scmp.eq.s32.totalorder %s16, 0
    %p178 = por %p176, %p177
    %p179 = scmp.le.s32.totalorder 1, %s10
    %p180 = scmp.lt.s32.totalorder %s10, 3
    %p181 = pnand %p179, %p180
    %p182 = pneg %p181
    // Predicated region
    $region9: #{stargan_discriminator.4} parent=5 // pred_check
      _
    $region10: #{stargan_discriminator.4} parent=5 // pred_check_branch
      %184 = sbr.rel (%p181) target = $region12
    $region11: #{stargan_discriminator.4} parent=5 // pred_region
      %s185 = ssub.s32 %s10, 1
      // Predicated region
      $region13: #{stargan_discriminator.4} parent=11 // pred_check
        %p186 = pneg %p115
      $region14: #{stargan_discriminator.4} parent=11 // pred_check_branch
        %188 = sbr.rel (%p186) target = $region16
      $region15: #{stargan_discriminator.4} parent=11 // pred_region
        %p189 = scmp.lt.s32.totalorder %s20, 0
        %s190 = scalar_select %p189, %s20, 0
        %s191 = smul.addr %s190, 4
        %s192 = scalar_lea.vmem %s2, %s191
      $region16: #{stargan_discriminator.4} parent=11 // pred_fallthru
        _
      // Predicated region
      $region17: #{stargan_discriminator.4} parent=11 // pred_check
        %p193 = pneg %p141
      $region18: #{stargan_discriminator.4} parent=11 // pred_check_branch
        %195 = sbr.rel (%p193) target = $region20
      $region19: #{stargan_discriminator.4} parent=11 // pred_region
        %p196 = scmp.lt.s32.totalorder %s20, 0
        %s197 = scalar_select %p196, %s20, 0
        %s198 = scalar_lea.vmem %s3, %s197
      $region20: #{stargan_discriminator.4} parent=11 // pred_fallthru
        _
    $region12: #{stargan_discriminator.4} parent=5 // pred_fallthru
      _
    %p199 = scmp.lt.s32.totalorder %s10, 2
    // Predicated region
    $region21: #{stargan_discriminator.4} parent=5 // pred_check
      %p200 = pneg %p199
    $region22: #{stargan_discriminator.4} parent=5 // pred_check_branch
      %202 = sbr.rel (%p200) target = $region24
    $region23: #{stargan_discriminator.4} parent=5 // pred_region
      // Predicated region
      $region25: #{stargan_discriminator.4} parent=23 // pred_check
        %p203 = pneg %p51
      $region26: #{stargan_discriminator.4} parent=23 // pred_check_branch
        %205 = sbr.rel (%p203) target = $region28
      $region27: #{stargan_discriminator.4} parent=23 // pred_region
        %s206 = smul.u32 8, %s19
        %s207 = ssub.s32 9, %s206
        %p208 = scmp.lt.s32.totalorder %s207, 8
        %s209 = scalar_select %p208, %s207, 8
        %s210 = smul.u32 64, %s209
        %p211 = scmp.lt.s32.totalorder %s18, 1
        %s212 = scalar_select %p211, %s18, 1
        %p213 = scmp.lt.s32.totalorder %s206, 8
        %s214 = scalar_select %p213, %s206, 8
        %s215 = smul.addr %s212, 9
        %s216 = sadd.s32 %s214, %s215
        %s217 = smul.addr %s216, 4
        %s218 = scalar_lea.vmem %s0, %s217
        %s219 = smul.u32 8, %s19
        %s220 = ssub.s32 9, %s219
        %p221 = scmp.lt.s32.totalorder %s220, 8
        %s222 = scalar_select %p221, %s220, 8
        %s223 = smul.u32 64, %s222
      $region28: #{stargan_discriminator.4} parent=23 // pred_fallthru
        _
      // Predicated region
      $region29: #{stargan_discriminator.4} parent=23 // pred_check
        %p224 = pneg %p83
      $region30: #{stargan_discriminator.4} parent=23 // pred_check_branch
        %226 = sbr.rel (%p224) target = $region32
      $region31: #{stargan_discriminator.4} parent=23 // pred_region
        %s227 = sadd.s32 %s19, 1
        %s228 = smul.u32 %s227, 8
        %p229 = scmp.lt.s32.totalorder %s18, 1
        %s230 = scalar_select %p229, %s18, 1
        %p231 = scmp.lt.s32.totalorder %s228, 8
        %s232 = scalar_select %p231, %s228, 8
        %s233 = smul.addr %s230, 9
        %s234 = sadd.s32 %s232, %s233
        %s235 = smul.addr %s234, 4
        %s236 = scalar_lea.vmem %s1, %s235
        %s237 = sadd.s32 %s19, 1
        %s238 = smul.u32 %s237, 8
      $region32: #{stargan_discriminator.4} parent=23 // pred_fallthru
        _
    $region24: #{stargan_discriminator.4} parent=5 // pred_fallthru
      _
    %p239 = scmp.le.s32.totalorder 1, %s10
    %p240 = scmp.lt.s32.totalorder %s10, 3
    %p241 = pnand %p239, %p240
    %p242 = pneg %p241
    // Predicated region
    $region33: #{stargan_discriminator.4} parent=5 // pred_check
      _
    $region34: #{stargan_discriminator.4} parent=5 // pred_check_branch
      %244 = sbr.rel (%p241) target = $region36
    $region35: #{stargan_discriminator.4} parent=5 // pred_region
      %s245 = ssub.s32 %s10, 1
      %s246 = smul.u32 8, %s22
      %s247 = ssub.s32 9, %s246
      %p248 = scmp.lt.s32.totalorder %s247, 8
      %s249 = scalar_select %p248, %s247, 8
      %s250 = smul.u32 64, %s249
      %p251 = scmp.lt.s32.totalorder %s21, 1
      %s252 = scalar_select %p251, %s21, 1
      %p253 = scmp.lt.s32.totalorder %s246, 8
      %s254 = scalar_select %p253, %s246, 8
      %s255 = smul.addr %s252, 9
      %s256 = sadd.s32 %s254, %s255
      %s257 = smul.addr %s256, 4
      %s258 = scalar_lea.vmem %s0, %s257
      %p259 = pneg %p57
      %p260 = pneg %p54
      %s261 = sadd.s32 %s22, 1
      %s262 = smul.u32 %s261, 8
      %p263 = scmp.lt.s32.totalorder %s21, 1
      %s264 = scalar_select %p263, %s21, 1
      %p265 = scmp.lt.s32.totalorder %s262, 8
      %s266 = scalar_select %p265, %s262, 8
      %s267 = smul.addr %s264, 9
      %s268 = sadd.s32 %s266, %s267
      %s269 = smul.addr %s268, 4
      %s270 = scalar_lea.vmem %s1, %s269
      %p271 = pneg %p89
      %p272 = pneg %p86
      %p273 = scmp.lt.s32.totalorder %s20, 0
      %s274 = scalar_select %p273, %s20, 0
      %s275 = smul.addr %s274, 4
      %s276 = scalar_lea.vmem %s2, %s275
      %p277 = pneg %p115
      %p278 = pneg %p112
      %p279 = scmp.lt.s32.totalorder %s20, 0
      %s280 = scalar_select %p279, %s20, 0
      %s281 = scalar_lea.vmem %s3, %s280
      %p282 = pneg %p141
      %p283 = pneg %p138
      %p284 = pneg %p171
      %p285 = pneg %p168
      %s286 = smul.u32 8, %s22
      %p287 = scmp.lt.s32.totalorder %s21, 1
      %s288 = scalar_select %p287, %s21, 1
      %p289 = scmp.lt.s32.totalorder %s286, 7
      %s290 = scalar_select %p289, %s286, 7
      %p291 = scmp.lt.s32.totalorder %s20, 0
      %s292 = scalar_select %p291, %s20, 0
      %s293 = sadd.s32 %s292, %s290
      %s294 = smul.addr %s288, 8
      %s295 = sadd.s32 %s293, %s294
      %s296 = smul.addr %s295, 4
      %s297 = scalar_lea.vmem %s4, %s296
      %s298 = smul.u32 8, %s22
      %s299 = ssub.s32 9, %s298
      %p300 = scmp.lt.s32.totalorder %s299, 8
      %s301 = scalar_select %p300, %s299, 8
      %s302 = smul.u32 64, %s301
      %p303 = scmp.lt.s32.totalorder %s21, 1
      %s304 = scalar_select %p303, %s21, 1
      %p305 = scmp.lt.s32.totalorder %s298, 8
      %s306 = scalar_select %p305, %s298, 8
      %s307 = smul.addr %s304, 9
      %s308 = sadd.s32 %s306, %s307
      %s309 = smul.addr %s308, 4
      %s310 = scalar_lea.vmem %s0, %s309
      %s311 = smul.u32 8, %s22
      %s312 = ssub.s32 9, %s311
      %p313 = scmp.lt.s32.totalorder %s312, 8
      %s314 = scalar_select %p313, %s312, 8
      %s315 = smul.u32 64, %s314
      %s316 = sadd.s32 %s22, 1
      %s317 = smul.u32 %s316, 8
      %p318 = scmp.lt.s32.totalorder %s21, 1
      %s319 = scalar_select %p318, %s21, 1
      %p320 = scmp.lt.s32.totalorder %s317, 8
      %s321 = scalar_select %p320, %s317, 8
      %s322 = smul.addr %s319, 9
      %s323 = sadd.s32 %s321, %s322
      %s324 = smul.addr %s323, 4
      %s325 = scalar_lea.vmem %s1, %s324
      %s326 = sadd.s32 %s22, 1
      %s327 = smul.u32 %s326, 8
      %p328 = scmp.lt.s32.totalorder %s20, 0
      %s329 = scalar_select %p328, %s20, 0
      %s330 = smul.addr %s329, 4
      %s331 = scalar_lea.vmem %s2, %s330
      %p332 = scmp.lt.s32.totalorder %s20, 0
      %s333 = scalar_select %p332, %s20, 0
      %s334 = scalar_lea.vmem %s3, %s333
      %s335 = smul.u32 8, %s22
      %p336 = scmp.lt.s32.totalorder %s21, 1
      %s337 = scalar_select %p336, %s21, 1
      %p338 = scmp.lt.s32.totalorder %s335, 7
      %s339 = scalar_select %p338, %s335, 7
      %p340 = scmp.lt.s32.totalorder %s20, 0
      %s341 = scalar_select %p340, %s20, 0
      %s342 = sadd.s32 %s341, %s339
      %s343 = smul.addr %s337, 8
      %s344 = sadd.s32 %s342, %s343
      %s345 = smul.addr %s344, 4
      %s346 = scalar_lea.vmem %s4, %s345
      %s347 = smul.u32 8, %s22
      %v349 = vld [vmem:[%s310] sm:$0xf]
      %v350 = vld [vmem:[%s310 + $0x4] sm:$0xf]
      %v351 = vld [vmem:[%s310 + $0x8] sm:$0xf]
      %v352 = vld [vmem:[%s310 + $0xc] sm:$0xf]
      %v353 = vld [vmem:[%s310 + $0x10] sm:$0xf]
      %v354 = vld [vmem:[%s310 + $0x14] sm:$0xf]
      %v355 = vld [vmem:[%s310 + $0x18] sm:$0xf]
      %v356 = vld [vmem:[%s310 + $0x1c] sm:$0xf]
      %v357 = vld [vmem:[%s325] sm:$0xf]
      %v365 = vunpack.c.l.b16 %v350
      %v366 = vunpack.c.l.b16 %v351
      %v367 = vunpack.c.l.b16 %v352
      %v368 = vunpack.c.l.b16 %v353
      %v369 = vunpack.c.l.b16 %v354
      %v370 = vunpack.c.l.b16 %v355
      %v371 = vunpack.c.l.b16 %v356
      %v372 = vpack.c.b16 %v366, %v365
      %v373 = vpack.c.b16 %v368, %v367
      %v374 = vpack.c.b16 %v370, %v369
      %v375 = vpack.c.b16 %v371, %v371
      %v380 = vunpack.c.l.b16 %v357
      %v381 = vpack.c.b16 %v380, %v380
      %vm382 = vcmask 1043456
      %v385 = vsel %vm382, %v375, %v381
      %v387 = vld [vmem:[%s331] sm:$0xf]
      %v388 = vld [vmem:[%s331 + $0x4] sm:$0xf]
      %v389 = vld [vmem:[%s331 + $0x8] sm:$0xf]
      %v390 = vld [vmem:[%s331 + $0xc] sm:$0xf]
      %v391 = vld [vmem:[%s331 + $0x10] sm:$0xf]
      %v392 = vld [vmem:[%s331 + $0x14] sm:$0xf]
      %v393 = vld [vmem:[%s331 + $0x18] sm:$0xf]
      %v394 = vld [vmem:[%s331 + $0x1c] sm:$0xf]
      %v395 = vld [vmem:[%s331 + $0x20] sm:$0xf]
      %v396 = vld [vmem:[%s331 + $0x24] sm:$0xf]
      %v397 = vld [vmem:[%s331 + $0x28] sm:$0xf]
      %v398 = vld [vmem:[%s331 + $0x2c] sm:$0xf]
      %v399 = vld [vmem:[%s331 + $0x30] sm:$0xf]
      %v400 = vld [vmem:[%s331 + $0x34] sm:$0xf]
      %v401 = vld [vmem:[%s331 + $0x38] sm:$0xf]
      %v402 = vld [vmem:[%s331 + $0x3c] sm:$0xf]
      %s403 = scalar_lea.vmem %s331, 64
      %v404 = vld [vmem:[%s403] sm:$0xf]
      %v405 = vld [vmem:[%s403 + $0x4] sm:$0xf]
      %v406 = vld [vmem:[%s403 + $0x8] sm:$0xf]
      %v407 = vld [vmem:[%s403 + $0xc] sm:$0xf]
      %v408 = vld [vmem:[%s403 + $0x10] sm:$0xf]
      %v409 = vld [vmem:[%s403 + $0x14] sm:$0xf]
      %v410 = vld [vmem:[%s403 + $0x18] sm:$0xf]
      %v411 = vld [vmem:[%s403 + $0x1c] sm:$0xf]
      %v412 = vld [vmem:[%s403 + $0x20] sm:$0xf]
      %v413 = vld [vmem:[%s403 + $0x24] sm:$0xf]
      %v414 = vld [vmem:[%s403 + $0x28] sm:$0xf]
      %v415 = vld [vmem:[%s403 + $0x2c] sm:$0xf]
      %v416 = vld [vmem:[%s403 + $0x30] sm:$0xf]
      %v417 = vld [vmem:[%s403 + $0x34] sm:$0xf]
      %v418 = vld [vmem:[%s403 + $0x38] sm:$0xf]
      %v419 = vld [vmem:[%s403 + $0x3c] sm:$0xf]
      %v436 = vunpack.c.l.b16 %v404
      %v437 = vunpack.c.l.b16 %v405
      %v438 = vunpack.c.l.b16 %v406
      %v439 = vunpack.c.l.b16 %v407
      %v440 = vunpack.c.l.b16 %v408
      %v441 = vunpack.c.l.b16 %v409
      %v442 = vunpack.c.l.b16 %v410
      %v443 = vunpack.c.l.b16 %v411
      %v444 = vunpack.c.l.b16 %v412
      %v445 = vunpack.c.l.b16 %v413
      %v446 = vunpack.c.l.b16 %v414
      %v447 = vunpack.c.l.b16 %v415
      %v448 = vunpack.c.l.b16 %v416
      %v449 = vunpack.c.l.b16 %v417
      %v450 = vunpack.c.l.b16 %v418
      %v451 = vunpack.c.l.b16 %v419
      %v452 = vpack.c.b16 %v437, %v436
      %v453 = vpack.c.b16 %v439, %v438
      %v454 = vpack.c.b16 %v441, %v440
      %v455 = vpack.c.b16 %v443, %v442
      %v456 = vpack.c.b16 %v445, %v444
      %v457 = vpack.c.b16 %v447, %v446
      %v458 = vpack.c.b16 %v449, %v448
      %v459 = vpack.c.b16 %v451, %v450
      %468 = vmatprep.subr.bf16.mxu0 0
      %469 = vmatpush1.bf16.msra.mxu0 %v452
      %470 = vmatprep.subr.bf16.mxu0 0
      %471 = vmatpush1.bf16.msra.mxu0 %v453
      %472 = vmatprep.subr.bf16.mxu0 0
      %473 = vmatpush1.bf16.msra.mxu0 %v454
      %474 = vmatprep.subr.bf16.mxu0 0
      %475 = vmatpush1.bf16.msra.mxu0 %v455
      %476 = vmatprep.subr.bf16.mxu0 0
      %477 = vmatpush1.bf16.msra.mxu0 %v456
      %478 = vmatprep.subr.bf16.mxu0 0
      %479 = vmatpush1.bf16.msra.mxu0 %v457
      %480 = vmatprep.subr.bf16.mxu0 0
      %481 = vmatpush1.bf16.msra.mxu0 %v458
      %482 = vmatprep.subr.bf16.mxu0 0
      %483 = vmatpush1.bf16.msra.mxu0 %v459
      %484 = vmatprep.subr.bf16.mxu0 0
      %485 = vmatpush1.bf16.msra.mxu0 0
      %486 = vmatprep.subr.bf16.mxu0 0
      %487 = vmatpush1.bf16.msra.mxu0 0
      %488 = vmatprep.subr.bf16.mxu0 0
      %489 = vmatpush1.bf16.msra.mxu0 0
      %490 = vmatprep.subr.bf16.mxu0 0
      %491 = vmatpush1.bf16.msra.mxu0 0
      %492 = vmatprep.subr.bf16.mxu0 0
      %493 = vmatpush1.bf16.msra.mxu0 0
      %494 = vmatprep.subr.bf16.mxu0 0
      %495 = vmatpush1.bf16.msra.mxu0 0
      %496 = vmatprep.subr.bf16.mxu0 0
      %497 = vmatpush1.bf16.msra.mxu0 0
      %498 = vmatprep.subr.bf16.mxu0 0
      %499 = vmatpush1.bf16.msra.mxu0 0
      %500 = vmatprep.mubr.bf16.mxu0 0
      %501 = vmatmul.mubr.bf16.gmra.mrb[0].mxu0 %v372
      %v502 = vpop.f32.mrb[0].mxu0
      %v503 = vadd.f32 0.0, %v502
      %v504 = vpop.f32.mrb[0].mxu0
      %v505 = vpop.f32.mrb[0].mxu0
      %v506 = vadd.f32 0.0, %v505
      %v507 = vpop.f32.mrb[0].mxu0
      %508 = vmatprep.mubr.bf16.mxu0 0
      %509 = vmatmul.mubr.bf16.gmra.mrb[0].mxu0 %v373
      %v510 = vpop.f32.mrb[0].mxu0
      %v511 = vadd.f32 0.0, %v510
      %v512 = vpop.f32.mrb[0].mxu0
      %v513 = vpop.f32.mrb[0].mxu0
      %v514 = vadd.f32 0.0, %v513
      %v515 = vpop.f32.mrb[0].mxu0
      %516 = vmatprep.mubr.bf16.mxu0 0
      %517 = vmatmul.mubr.bf16.gmra.mrb[0].mxu0 %v374
      %v518 = vpop.f32.mrb[0].mxu0
      %v519 = vadd.f32 0.0, %v518
      %v520 = vpop.f32.mrb[0].mxu0
      %v521 = vpop.f32.mrb[0].mxu0
      %v522 = vadd.f32 0.0, %v521
      %v523 = vpop.f32.mrb[0].mxu0
      %524 = vmatprep.mubr.bf16.mxu0 0
      %525 = vmatmul.mubr.bf16.gmra.mrb[0].mxu0 %v385
      %v526 = vpop.f32.mrb[0].mxu0
      %v527 = vadd.f32 0.0, %v526
      %v528 = vpop.f32.mrb[0].mxu0
      %v529 = vpop.f32.mrb[0].mxu0
      %v530 = vadd.f32 0.0, %v529
      %v531 = vpop.f32.mrb[0].mxu0
      %532 = vdwg.mxu0
      %v534 = vunpack.c.l.b16 %v349
      %v535 = vpack.c.b16 %v365, %v534
      %v536 = vpack.c.b16 %v367, %v366
      %v537 = vpack.c.b16 %v369, %v368
      %v538 = vpack.c.b16 %v371, %v370
      %v559 = vunpack.c.l.b16 %v387
      %v560 = vunpack.c.l.b16 %v388
      %v561 = vunpack.c.l.b16 %v389
      %v562 = vunpack.c.l.b16 %v390
      %v563 = vunpack.c.l.b16 %v391
      %v564 = vunpack.c.l.b16 %v392
      %v565 = vunpack.c.l.b16 %v393
      %v566 = vunpack.c.l.b16 %v394
      %v567 = vunpack.c.l.b16 %v395
      %v568 = vunpack.c.l.b16 %v396
      %v569 = vunpack.c.l.b16 %v397
      %v570 = vunpack.c.l.b16 %v398
      %v571 = vunpack.c.l.b16 %v399
      %v572 = vunpack.c.l.b16 %v400
      %v573 = vunpack.c.l.b16 %v401
      %v574 = vunpack.c.l.b16 %v402
      %v575 = vpack.c.b16 %v560, %v559
      %v576 = vpack.c.b16 %v562, %v561
      %v577 = vpack.c.b16 %v564, %v563
      %v578 = vpack.c.b16 %v566, %v565
      %v579 = vpack.c.b16 %v568, %v567
      %v580 = vpack.c.b16 %v570, %v569
      %v581 = vpack.c.b16 %v572, %v571
      %v582 = vpack.c.b16 %v574, %v573
      %591 = vmatprep.subr.bf16.mxu0 0
      %592 = vmatpush1.bf16.msra.mxu0 %v575
      %593 = vmatprep.subr.bf16.mxu0 0
      %594 = vmatpush1.bf16.msra.mxu0 %v576
      %595 = vmatprep.subr.bf16.mxu0 0
      %596 = vmatpush1.bf16.msra.mxu0 %v577
      %597 = vmatprep.subr.bf16.mxu0 0
      %598 = vmatpush1.bf16.msra.mxu0 %v578
      %599 = vmatprep.subr.bf16.mxu0 0
      %600 = vmatpush1.bf16.msra.mxu0 %v579
      %601 = vmatprep.subr.bf16.mxu0 0
      %602 = vmatpush1.bf16.msra.mxu0 %v580
      %603 = vmatprep.subr.bf16.mxu0 0
      %604 = vmatpush1.bf16.msra.mxu0 %v581
      %605 = vmatprep.subr.bf16.mxu0 0
      %606 = vmatpush1.bf16.msra.mxu0 %v582
      %607 = vmatprep.subr.bf16.mxu0 0
      %608 = vmatpush1.bf16.msra.mxu0 0
      %609 = vmatprep.subr.bf16.mxu0 0
      %610 = vmatpush1.bf16.msra.mxu0 0
      %611 = vmatprep.subr.bf16.mxu0 0
      %612 = vmatpush1.bf16.msra.mxu0 0
      %613 = vmatprep.subr.bf16.mxu0 0
      %614 = vmatpush1.bf16.msra.mxu0 0
      %615 = vmatprep.subr.bf16.mxu0 0
      %616 = vmatpush1.bf16.msra.mxu0 0
      %617 = vmatprep.subr.bf16.mxu0 0
      %618 = vmatpush1.bf16.msra.mxu0 0
      %619 = vmatprep.subr.bf16.mxu0 0
      %620 = vmatpush1.bf16.msra.mxu0 0
      %621 = vmatprep.subr.bf16.mxu0 0
      %622 = vmatpush1.bf16.msra.mxu0 0
      %623 = vmatprep.mubr.bf16.mxu0 0
      %624 = vmatmul.mubr.bf16.gmra.mrb[0].mxu0 %v535
      %v625 = vpop.f32.mrb[0].mxu0
      %v626 = vadd.f32 %v503, %v625
      %v627 = vpop.f32.mrb[0].mxu0
      %v628 = vpop.f32.mrb[0].mxu0
      %v629 = vadd.f32 %v506, %v628
      %v630 = vpop.f32.mrb[0].mxu0
      %631 = vmatprep.mubr.bf16.mxu0 0
      %632 = vmatmul.mubr.bf16.gmra.mrb[0].mxu0 %v536
      %v633 = vpop.f32.mrb[0].mxu0
      %v634 = vadd.f32 %v511, %v633
      %v635 = vpop.f32.mrb[0].mxu0
      %v636 = vpop.f32.mrb[0].mxu0
      %v637 = vadd.f32 %v514, %v636
      %v638 = vpop.f32.mrb[0].mxu0
      %639 = vmatprep.mubr.bf16.mxu0 0
      %640 = vmatmul.mubr.bf16.gmra.mrb[0].mxu0 %v537
      %v641 = vpop.f32.mrb[0].mxu0
      %v642 = vadd.f32 %v519, %v641
      %v643 = vpop.f32.mrb[0].mxu0
      %v644 = vpop.f32.mrb[0].mxu0
      %v645 = vadd.f32 %v522, %v644
      %v646 = vpop.f32.mrb[0].mxu0
      %647 = vmatprep.mubr.bf16.mxu0 0
      %648 = vmatmul.mubr.bf16.gmra.mrb[0].mxu0 %v538
      %v649 = vpop.f32.mrb[0].mxu0
      %v650 = vadd.f32 %v527, %v649
      %v651 = vpop.f32.mrb[0].mxu0
      %v652 = vpop.f32.mrb[0].mxu0
      %v653 = vadd.f32 %v530, %v652
      %v654 = vpop.f32.mrb[0].mxu0
      %655 = vdwg.mxu0
      %v656 = vld [vmem:[%s334] sm:$0x1]
      %v658 = vlaneseq
      %v659 = vshrl.u32 %v658, 7
      %v660 = vsub.s32 0, %v659
      %v661 = vrot.slane %v656, %v660
      %v663 = vadd.f32 %v626, %v661
      %v664 = vadd.f32 %v629, %v661
      %v665 = vadd.f32 %v634, %v661
      %v666 = vadd.f32 %v637, %v661
      %v667 = vadd.f32 %v642, %v661
      %v668 = vadd.f32 %v645, %v661
      %v669 = vadd.f32 %v650, %v661
      %v670 = vadd.f32 %v653, %v661
      %vm671 = vcmp.ge.f32.partialorder %v663, 0.0
      %vm672 = vcmp.ge.f32.partialorder %v664, 0.0
      %vm673 = vcmp.ge.f32.partialorder %v665, 0.0
      %vm674 = vcmp.ge.f32.partialorder %v666, 0.0
      %vm675 = vcmp.ge.f32.partialorder %v667, 0.0
      %vm676 = vcmp.ge.f32.partialorder %v668, 0.0
      %vm677 = vcmp.ge.f32.partialorder %v669, 0.0
      %vm678 = vcmp.ge.f32.partialorder %v670, 0.0
      %v679 = vmul.f32 %v663, 0.01
      %v680 = vmul.f32 %v664, 0.01
      %v681 = vmul.f32 %v665, 0.01
      %v682 = vmul.f32 %v666, 0.01
      %v683 = vmul.f32 %v667, 0.01
      %v684 = vmul.f32 %v668, 0.01
      %v685 = vmul.f32 %v669, 0.01
      %v686 = vmul.f32 %v670, 0.01
      %v687 = vsel %vm671, %v663, %v679
      %v688 = vsel %vm672, %v664, %v680
      %v689 = vsel %vm673, %v665, %v681
      %v690 = vsel %vm674, %v666, %v682
      %v691 = vsel %vm675, %v667, %v683
      %v692 = vsel %vm676, %v668, %v684
      %v693 = vsel %vm677, %v669, %v685
      %v694 = vsel %vm678, %v670, %v686
      %v695 = vpack.c.bf16 %v688, %v687
      %v696 = vpack.c.bf16 %v690, %v689
      %v697 = vpack.c.bf16 %v692, %v691
      %v698 = vpack.c.bf16 %v694, %v693
      %v703 = vunpack.c.l.b16 %v695
      %v704 = vunpack.c.h.b16 %v695
      %v705 = vunpack.c.l.b16 %v696
      %v706 = vunpack.c.h.b16 %v696
      %v707 = vunpack.c.l.b16 %v697
      %v708 = vunpack.c.h.b16 %v697
      %v709 = vunpack.c.l.b16 %v698
      %v710 = vunpack.c.h.b16 %v698
      %v711 = vpack.c.b16 %v703, %v703
      %v712 = vpack.c.b16 %v704, %v704
      %v713 = vpack.c.b16 %v705, %v705
      %v714 = vpack.c.b16 %v706, %v706
      %v715 = vpack.c.b16 %v707, %v707
      %v716 = vpack.c.b16 %v708, %v708
      %v717 = vpack.c.b16 %v709, %v709
      %v718 = vpack.c.b16 %v710, %v710
      %vm727 = vcmask 257024
      %728 = vst.msk [vmem:[%s346] sm:$0xf] %vm727, %v711
      %729 = vst.msk [vmem:[%s346 + $0x4] sm:$0xf] %vm727, %v712
      %730 = vst.msk [vmem:[%s346 + $0x8] sm:$0xf] %vm727, %v713
      %731 = vst.msk [vmem:[%s346 + $0xc] sm:$0xf] %vm727, %v714
      %732 = vst.msk [vmem:[%s346 + $0x10] sm:$0xf] %vm727, %v715
      %733 = vst.msk [vmem:[%s346 + $0x14] sm:$0xf] %vm727, %v716
      %734 = vst.msk [vmem:[%s346 + $0x18] sm:$0xf] %vm727, %v717
      %735 = vst.msk [vmem:[%s346 + $0x1c] sm:$0xf] %vm727, %v718
      %s736 = smul.u32 8, %s22
      %p737 = scmp.lt.s32.totalorder %s21, 1
      %s738 = scalar_select %p737, %s21, 1
      %p739 = scmp.lt.s32.totalorder %s736, 7
      %s740 = scalar_select %p739, %s736, 7
      %p741 = scmp.lt.s32.totalorder %s20, 0
      %s742 = scalar_select %p741, %s20, 0
      %s743 = sadd.s32 %s742, %s740
      %s744 = smul.addr %s738, 8
      %s745 = sadd.s32 %s743, %s744
      %s746 = smul.addr %s745, 4
      %s747 = scalar_lea.vmem %s4, %s746
      // Predicated region
      $region37: #{stargan_discriminator.4} parent=35 // pred_check
        %p748 = pneg %p168
      $region38: #{stargan_discriminator.4} parent=35 // pred_check_branch
        %750 = sbr.rel (%p748) target = $region40
      $region39: #{stargan_discriminator.4} parent=35 // pred_region
        %s751 = smul.u32 8, %s22
      $region40: #{stargan_discriminator.4} parent=35 // pred_fallthru
        _
    $region36: #{stargan_discriminator.4} parent=5 // pred_fallthru
      _
    %p752 = scmp.le.s32.totalorder 2, %s10
    // Predicated region
    $region41: #{stargan_discriminator.4} parent=5 // pred_check
      %p753 = pneg %p752
    $region42: #{stargan_discriminator.4} parent=5 // pred_check_branch
      %755 = sbr.rel (%p753) target = $region44
    $region43: #{stargan_discriminator.4} parent=5 // pred_region
      %s756 = ssub.s32 %s10, 2
      // Predicated region
      $region45: #{stargan_discriminator.4} parent=43 // pred_check
        %p757 = pneg %p174
      $region46: #{stargan_discriminator.4} parent=43 // pred_check_branch
        %759 = sbr.rel (%p757) target = $region48
      $region47: #{stargan_discriminator.4} parent=43 // pred_region
        %s760 = smul.u32 8, %s25
        %p761 = scmp.lt.s32.totalorder %s24, 1
        %s762 = scalar_select %p761, %s24, 1
        %p763 = scmp.lt.s32.totalorder %s760, 7
        %s764 = scalar_select %p763, %s760, 7
        %p765 = scmp.lt.s32.totalorder %s23, 0
        %s766 = scalar_select %p765, %s23, 0
        %s767 = sadd.s32 %s766, %s764
        %s768 = smul.addr %s762, 8
        %s769 = sadd.s32 %s767, %s768
        %s770 = smul.addr %s769, 4
        %s771 = scalar_lea.vmem %s4, %s770
      $region48: #{stargan_discriminator.4} parent=43 // pred_fallthru
        _
    $region44: #{stargan_discriminator.4} parent=5 // pred_fallthru
      _
  $region6: #{stargan_discriminator.4} parent=0 // loop_footer
    %s14 = sadd.s32 1, %s10
  $region7: #{stargan_discriminator.4} parent=0 // loop_footer_branch
    %9 = sbr.rel target = $region3
  $region8: #{stargan_discriminator.4} parent=0 // loop_exit
    _

// kernel: stargan_discriminator.5
$region0: #{stargan_discriminator.5}
  #allocation0 [shape = 'u32[]', space=smem, size = 0x4, offset = 0x4, fixed_abs, tag = 'smem constant byte address 0x4 - core index']
  #allocation1 [shape = 'u32[144,128]{1,0:T(1,128)}', space=vmem, size = 0x12000, scoped, tag = 'internal scratch']
  %s0 = inlined_call_operand.vmem [shape: bf16[2,20,256], index: 0, kind: input, shape index: {}]
  %s1 = inlined_call_operand.vmem [shape: bf16[2,256,64], index: 1, kind: input, shape index: {}]
  %s2 = inlined_call_operand.vmem [shape: f32[1,64], index: 2, kind: input, shape index: {}]
  %s3 = inlined_call_operand.vmem [shape: bf16[2,16,64], index: 3, kind: output, shape index: {}]
  %s4 = sld [smem:[#allocation0]]
  $region45: #{stargan_discriminator.5} parent=0
    _
  %s6 = ssub.s32 1, %s4
  %s7 = scalar_select 0, %s6, %s4
  loop: start=0, step=1, limit=4
  $region2: #{stargan_discriminator.5} parent=0 // loop_pre_header
    _
  $region3: #{stargan_discriminator.5} parent=0 // loop_header
    %s9 = sphi 0, %s13
    %p10 = scmp.ge.s32.totalorder %s9, 4
    %s16 = sphi 0, %s28
    %s17 = sphi 0, %s24
    %s18 = sphi 0, %s16
    %s19 = sphi 0, %s17
    %s20 = sphi 0, %s18
    %s21 = sphi 0, %s19
    %s31 = sphi 0, %s33
    %s34 = sphi 0, %s31
    %s35 = sphi 0, %s34
    %s51 = sphi 0, %s35
    %s57 = sphi 0, %s59
    %s60 = sphi 0, %s57
    %s61 = sphi 0, %s60
    %s77 = sphi 0, %s61
    %s83 = sphi 0, %s85
    %s86 = sphi 0, %s83
    %s87 = sphi 0, %s86
    %s103 = sphi 0, %s87
    %s111 = sphi 0, %s113
    %s114 = sphi 0, %s111
    %s115 = sphi 0, %s114
    %s131 = sphi 0, %s115
  $region4: #{stargan_discriminator.5} parent=0 // loop_header_branch
    %12 = sbr.rel (%p10) target = $region8
  $region5: #{stargan_discriminator.5} parent=0 // loop_body
    %s14 = ssub.s32 %s9, 1
    %s15 = ssub.s32 %s9, 2
    %s22 = sadd.s32 1, %s17
    %p23 = scmp.ge.s32.totalorder %s22, 2
    %s24 = scalar_select %p23, 0, %s22
    %s25 = sadd.s32 1, %s16
    %s26 = scalar_select %p23, %s25, %s16
    %p27 = scmp.ge.s32.totalorder %s26, 1
    %s28 = scalar_select %p27, 0, %s26
    %s29 = ssub.s32 %s17, %s24
    %p30 = scmp.eq.s32.totalorder %s29, 0
    %s32 = sadd.s32 %s31, 1
    %s33 = scalar_select %p30, %s31, %s32
    %p36 = pneg %p30
    %p37 = scmp.eq.s32.totalorder %s9, 1
    %p38 = por %p36, %p37
    %p39 = scmp.ne.s32.totalorder %s31, %s34
    %p40 = scmp.eq.s32.totalorder %s9, 0
    %p41 = por %p39, %p40
    %p42 = scmp.ne.s32.totalorder %s31, %s34
    %p43 = scmp.eq.s32.totalorder %s14, 1
    %p44 = por %p42, %p43
    %p45 = scmp.ne.s32.totalorder %s34, %s35
    %p46 = scmp.eq.s32.totalorder %s14, 0
    %p47 = por %p45, %p46
    %p48 = scmp.ne.s32.totalorder %s34, %s35
    %p49 = scmp.eq.s32.totalorder %s15, 1
    %p50 = por %p48, %p49
    %p52 = scmp.ne.s32.totalorder %s35, %s51
    %p53 = scmp.eq.s32.totalorder %s15, 0
    %p54 = por %p52, %p53
    %s55 = ssub.s32 %s16, %s28
    %p56 = scmp.eq.s32.totalorder %s55, 0
    %s58 = sadd.s32 %s57, 1
    %s59 = scalar_select %p56, %s57, %s58
    %p62 = pneg %p56
    %p63 = scmp.eq.s32.totalorder %s9, 1
    %p64 = por %p62, %p63
    %p65 = scmp.ne.s32.totalorder %s57, %s60
    %p66 = scmp.eq.s32.totalorder %s9, 0
    %p67 = por %p65, %p66
    %p68 = scmp.ne.s32.totalorder %s57, %s60
    %p69 = scmp.eq.s32.totalorder %s14, 1
    %p70 = por %p68, %p69
    %p71 = scmp.ne.s32.totalorder %s60, %s61
    %p72 = scmp.eq.s32.totalorder %s14, 0
    %p73 = por %p71, %p72
    %p74 = scmp.ne.s32.totalorder %s60, %s61
    %p75 = scmp.eq.s32.totalorder %s15, 1
    %p76 = por %p74, %p75
    %p78 = scmp.ne.s32.totalorder %s61, %s77
    %p79 = scmp.eq.s32.totalorder %s15, 0
    %p80 = por %p78, %p79
    %s81 = ssub.s32 %s16, %s28
    %p82 = scmp.eq.s32.totalorder %s81, 0
    %s84 = sadd.s32 %s83, 1
    %s85 = scalar_select %p82, %s83, %s84
    %p88 = pneg %p82
    %p89 = scmp.eq.s32.totalorder %s9, 1
    %p90 = por %p88, %p89
    %p91 = scmp.ne.s32.totalorder %s83, %s86
    %p92 = scmp.eq.s32.totalorder %s9, 0
    %p93 = por %p91, %p92
    %p94 = scmp.ne.s32.totalorder %s83, %s86
    %p95 = scmp.eq.s32.totalorder %s14, 1
    %p96 = por %p94, %p95
    %p97 = scmp.ne.s32.totalorder %s86, %s87
    %p98 = scmp.eq.s32.totalorder %s14, 0
    %p99 = por %p97, %p98
    %p100 = scmp.ne.s32.totalorder %s86, %s87
    %p101 = scmp.eq.s32.totalorder %s15, 1
    %p102 = por %p100, %p101
    %p104 = scmp.ne.s32.totalorder %s87, %s103
    %p105 = scmp.eq.s32.totalorder %s15, 0
    %p106 = por %p104, %p105
    %s107 = ssub.s32 %s17, %s24
    %s108 = ssub.s32 %s16, %s28
    %s109 = sor.u32 %s107, %s108
    %p110 = scmp.eq.s32.totalorder %s109, 0
    %s112 = sadd.s32 %s111, 1
    %s113 = scalar_select %p110, %s111, %s112
    %p116 = pneg %p110
    %p117 = scmp.eq.s32.totalorder %s9, 1
    %p118 = por %p116, %p117
    %p119 = scmp.ne.s32.totalorder %s111, %s114
    %p120 = scmp.eq.s32.totalorder %s9, 0
    %p121 = por %p119, %p120
    %p122 = scmp.ne.s32.totalorder %s111, %s114
    %p123 = scmp.eq.s32.totalorder %s14, 1
    %p124 = por %p122, %p123
    %p125 = scmp.ne.s32.totalorder %s114, %s115
    %p126 = scmp.eq.s32.totalorder %s14, 0
    %p127 = por %p125, %p126
    %p128 = scmp.ne.s32.totalorder %s114, %s115
    %p129 = scmp.eq.s32.totalorder %s15, 1
    %p130 = por %p128, %p129
    %p132 = scmp.ne.s32.totalorder %s115, %s131
    %p133 = scmp.eq.s32.totalorder %s15, 0
    %p134 = por %p132, %p133
    %p135 = scmp.le.s32.totalorder 1, %s9
    %p136 = scmp.lt.s32.totalorder %s9, 3
    %p137 = pnand %p135, %p136
    %p138 = pneg %p137
    // Predicated region
    $region9: #{stargan_discriminator.5} parent=5 // pred_check
      _
    $region10: #{stargan_discriminator.5} parent=5 // pred_check_branch
      %140 = sbr.rel (%p137) target = $region12
    $region11: #{stargan_discriminator.5} parent=5 // pred_region
      %s141 = ssub.s32 %s9, 1
      // Predicated region
      $region13: #{stargan_discriminator.5} parent=11 // pred_check
        %p142 = pneg %p73
      $region14: #{stargan_discriminator.5} parent=11 // pred_check_branch
        %144 = sbr.rel (%p142) target = $region16
      $region15: #{stargan_discriminator.5} parent=11 // pred_region
        %p145 = scmp.lt.s32.totalorder %s18, 0
        %s146 = scalar_select %p145, %s18, 0
        %s147 = smul.addr %s146, 4
        %s148 = scalar_lea.vmem %s1, %s147
      $region16: #{stargan_discriminator.5} parent=11 // pred_fallthru
        _
      // Predicated region
      $region17: #{stargan_discriminator.5} parent=11 // pred_check
        %p149 = pneg %p99
      $region18: #{stargan_discriminator.5} parent=11 // pred_check_branch
        %151 = sbr.rel (%p149) target = $region20
      $region19: #{stargan_discriminator.5} parent=11 // pred_region
        %p152 = scmp.lt.s32.totalorder %s18, 0
        %s153 = scalar_select %p152, %s18, 0
        %s154 = scalar_lea.vmem %s2, %s153
      $region20: #{stargan_discriminator.5} parent=11 // pred_fallthru
        _
    $region12: #{stargan_discriminator.5} parent=5 // pred_fallthru
      _
    %p155 = scmp.lt.s32.totalorder %s9, 2
    // Predicated region
    $region21: #{stargan_discriminator.5} parent=5 // pred_check
      %p156 = pneg %p155
    $region22: #{stargan_discriminator.5} parent=5 // pred_check_branch
      %158 = sbr.rel (%p156) target = $region24
    $region23: #{stargan_discriminator.5} parent=5 // pred_region
      // Predicated region
      $region25: #{stargan_discriminator.5} parent=23 // pred_check
        %p159 = pneg %p41
      $region26: #{stargan_discriminator.5} parent=23 // pred_check_branch
        %161 = sbr.rel (%p159) target = $region28
      $region27: #{stargan_discriminator.5} parent=23 // pred_region
        %p162 = scmp.lt.s32.totalorder %s17, 1
        %s163 = scalar_select %p162, %s17, 1
        %s164 = smul.addr %s163, 6
        %s165 = smul.addr %s164, 4
        %s166 = scalar_lea.vmem %s0, %s165
      $region28: #{stargan_discriminator.5} parent=23 // pred_fallthru
        _
    $region24: #{stargan_discriminator.5} parent=5 // pred_fallthru
      _
    %p167 = scmp.le.s32.totalorder 1, %s9
    %p168 = scmp.lt.s32.totalorder %s9, 3
    %p169 = pnand %p167, %p168
    %p170 = pneg %p169
    // Predicated region
    $region29: #{stargan_discriminator.5} parent=5 // pred_check
      _
    $region30: #{stargan_discriminator.5} parent=5 // pred_check_branch
      %172 = sbr.rel (%p169) target = $region32
    $region31: #{stargan_discriminator.5} parent=5 // pred_region
      %s173 = ssub.s32 %s9, 1
      %p174 = scmp.lt.s32.totalorder %s19, 1
      %s175 = scalar_select %p174, %s19, 1
      %s176 = smul.addr %s175, 6
      %s177 = smul.addr %s176, 4
      %s178 = scalar_lea.vmem %s0, %s177
      %p179 = pneg %p47
      %p180 = pneg %p44
      %p181 = scmp.lt.s32.totalorder %s18, 0
      %s182 = scalar_select %p181, %s18, 0
      %s183 = smul.addr %s182, 4
      %s184 = scalar_lea.vmem %s1, %s183
      %p185 = pneg %p73
      %p186 = pneg %p70
      %p187 = scmp.lt.s32.totalorder %s18, 0
      %s188 = scalar_select %p187, %s18, 0
      %s189 = scalar_lea.vmem %s2, %s188
      %p190 = pneg %p99
      %p191 = pneg %p96
      %p192 = pneg %p127
      %p193 = pneg %p124
      %p194 = scmp.lt.s32.totalorder %s19, 1
      %s195 = scalar_select %p194, %s19, 1
      %p196 = scmp.lt.s32.totalorder %s18, 0
      %s197 = scalar_select %p196, %s18, 0
      %s198 = smul.addr %s195, 2
      %s199 = sadd.s32 %s197, %s198
      %s200 = smul.addr %s199, 4
      %s201 = scalar_lea.vmem %s3, %s200
      %p202 = scmp.lt.s32.totalorder %s19, 1
      %s203 = scalar_select %p202, %s19, 1
      %s204 = smul.addr %s203, 6
      %s205 = smul.addr %s204, 4
      %s206 = scalar_lea.vmem %s0, %s205
      %p207 = scmp.lt.s32.totalorder %s18, 0
      %s208 = scalar_select %p207, %s18, 0
      %s209 = smul.addr %s208, 4
      %s210 = scalar_lea.vmem %s1, %s209
      %p211 = scmp.lt.s32.totalorder %s18, 0
      %s212 = scalar_select %p211, %s18, 0
      %s213 = scalar_lea.vmem %s2, %s212
      %p214 = scmp.lt.s32.totalorder %s19, 1
      %s215 = scalar_select %p214, %s19, 1
      %p216 = scmp.lt.s32.totalorder %s18, 0
      %s217 = scalar_select %p216, %s18, 0
      %s218 = smul.addr %s215, 2
      %s219 = sadd.s32 %s217, %s218
      %s220 = smul.addr %s219, 4
      %s221 = scalar_lea.vmem %s3, %s220
      %v223 = vld [vmem:[%s206] sm:$0xff]
      %v224 = vld [vmem:[%s206 + $0x8] sm:$0xff]
      %v225 = vld [vmem:[%s206 + $0x10] sm:$0x33]
      %v226 = vld [vmem:[%s210] sm:$0xf]
      %v227 = vld [vmem:[%s210 + $0x4] sm:$0xf]
      %v228 = vld [vmem:[%s210 + $0x8] sm:$0xf]
      %v229 = vld [vmem:[%s210 + $0xc] sm:$0xf]
      %v230 = vld [vmem:[%s210 + $0x10] sm:$0xf]
      %v231 = vld [vmem:[%s210 + $0x14] sm:$0xf]
      %v232 = vld [vmem:[%s210 + $0x18] sm:$0xf]
      %v233 = vld [vmem:[%s210 + $0x1c] sm:$0xf]
      %v234 = vld [vmem:[%s210 + $0x20] sm:$0xf]
      %v235 = vld [vmem:[%s210 + $0x24] sm:$0xf]
      %v236 = vld [vmem:[%s210 + $0x28] sm:$0xf]
      %v237 = vld [vmem:[%s210 + $0x2c] sm:$0xf]
      %v238 = vld [vmem:[%s210 + $0x30] sm:$0xf]
      %v239 = vld [vmem:[%s210 + $0x34] sm:$0xf]
      %v240 = vld [vmem:[%s210 + $0x38] sm:$0xf]
      %v241 = vld [vmem:[%s210 + $0x3c] sm:$0xf]
      %v242 = vld [vmem:[%s210 + $0x40] sm:$0xf]
      %v243 = vld [vmem:[%s210 + $0x44] sm:$0xf]
      %v244 = vld [vmem:[%s210 + $0x48] sm:$0xf]
      %v245 = vld [vmem:[%s210 + $0x4c] sm:$0xf]
      %v246 = vld [vmem:[%s210 + $0x50] sm:$0xf]
      %v247 = vld [vmem:[%s210 + $0x54] sm:$0xf]
      %v248 = vld [vmem:[%s210 + $0x58] sm:$0xf]
      %v249 = vld [vmem:[%s210 + $0x5c] sm:$0xf]
      %v250 = vld [vmem:[%s210 + $0x60] sm:$0xf]
      %v251 = vld [vmem:[%s210 + $0x64] sm:$0xf]
      %v252 = vld [vmem:[%s210 + $0x68] sm:$0xf]
      %v253 = vld [vmem:[%s210 + $0x6c] sm:$0xf]
      %v254 = vld [vmem:[%s210 + $0x70] sm:$0xf]
      %v255 = vld [vmem:[%s210 + $0x74] sm:$0xf]
      %v256 = vld [vmem:[%s210 + $0x78] sm:$0xf]
      %v257 = vld [vmem:[%s210 + $0x7c] sm:$0xf]
      %s258 = scalar_lea.vmem %s210, 128
      %v259 = vld [vmem:[%s258] sm:$0xf]
      %v260 = vld [vmem:[%s258 + $0x4] sm:$0xf]
      %v261 = vld [vmem:[%s258 + $0x8] sm:$0xf]
      %v262 = vld [vmem:[%s258 + $0xc] sm:$0xf]
      %v263 = vld [vmem:[%s258 + $0x10] sm:$0xf]
      %v264 = vld [vmem:[%s258 + $0x14] sm:$0xf]
      %v265 = vld [vmem:[%s258 + $0x18] sm:$0xf]
      %v266 = vld [vmem:[%s258 + $0x1c] sm:$0xf]
      %v267 = vld [vmem:[%s258 + $0x20] sm:$0xf]
      %v268 = vld [vmem:[%s258 + $0x24] sm:$0xf]
      %v269 = vld [vmem:[%s258 + $0x28] sm:$0xf]
      %v270 = vld [vmem:[%s258 + $0x2c] sm:$0xf]
      %v271 = vld [vmem:[%s258 + $0x30] sm:$0xf]
      %v272 = vld [vmem:[%s258 + $0x34] sm:$0xf]
      %v273 = vld [vmem:[%s258 + $0x38] sm:$0xf]
      %v274 = vld [vmem:[%s258 + $0x3c] sm:$0xf]
      %v275 = vld [vmem:[%s258 + $0x40] sm:$0xf]
      %v276 = vld [vmem:[%s258 + $0x44] sm:$0xf]
      %v277 = vld [vmem:[%s258 + $0x48] sm:$0xf]
      %v278 = vld [vmem:[%s258 + $0x4c] sm:$0xf]
      %v279 = vld [vmem:[%s258 + $0x50] sm:$0xf]
      %v280 = vld [vmem:[%s258 + $0x54] sm:$0xf]
      %v281 = vld [vmem:[%s258 + $0x58] sm:$0xf]
      %v282 = vld [vmem:[%s258 + $0x5c] sm:$0xf]
      %v283 = vld [vmem:[%s258 + $0x60] sm:$0xf]
      %v284 = vld [vmem:[%s258 + $0x64] sm:$0xf]
      %v285 = vld [vmem:[%s258 + $0x68] sm:$0xf]
      %v286 = vld [vmem:[%s258 + $0x6c] sm:$0xf]
      %v287 = vld [vmem:[%s258 + $0x70] sm:$0xf]
      %v288 = vld [vmem:[%s258 + $0x74] sm:$0xf]
      %v289 = vld [vmem:[%s258 + $0x78] sm:$0xf]
      %v290 = vld [vmem:[%s258 + $0x7c] sm:$0xf]
      %v294 = vunpack.c.l.b16 %v223
      %v295 = vunpack.c.h.b16 %v223
      %v296 = vunpack.c.l.b16 %v224
      %v297 = vunpack.c.h.b16 %v224
      %v298 = vunpack.c.l.b16 %v225
      %v299 = vunpack.c.h.b16 %v225
      %v300 = vpack.c.b16 %v296, %v294
      %v301 = vpack.c.b16 %v297, %v295
      %v302 = vpack.c.b16 %v298, %v298
      %v303 = vpack.c.b16 %v299, %v299
      %vm304 = vcmask 1045504
      %v305 = vrot.slane %v300, 2
      %v306 = vrot.slane %v302, 2
      %v307 = vsel %vm304, %v305, %v306
      %v308 = vrot.slane %v301, 2
      %v309 = vrot.slane %v303, 2
      %v310 = vsel %vm304, %v308, %v309
      %v345 = vunpack.c.l.b16 %v259
      %v346 = vunpack.c.l.b16 %v260
      %v347 = vunpack.c.l.b16 %v261
      %v348 = vunpack.c.l.b16 %v262
      %v349 = vunpack.c.l.b16 %v263
      %v350 = vunpack.c.l.b16 %v264
      %v351 = vunpack.c.l.b16 %v265
      %v352 = vunpack.c.l.b16 %v266
      %v353 = vunpack.c.l.b16 %v267
      %v354 = vunpack.c.l.b16 %v268
      %v355 = vunpack.c.l.b16 %v269
      %v356 = vunpack.c.l.b16 %v270
      %v357 = vunpack.c.l.b16 %v271
      %v358 = vunpack.c.l.b16 %v272
      %v359 = vunpack.c.l.b16 %v273
      %v360 = vunpack.c.l.b16 %v274
      %v361 = vunpack.c.l.b16 %v275
      %v362 = vunpack.c.l.b16 %v276
      %v363 = vunpack.c.l.b16 %v277
      %v364 = vunpack.c.l.b16 %v278
      %v365 = vunpack.c.l.b16 %v279
      %v366 = vunpack.c.l.b16 %v280
      %v367 = vunpack.c.l.b16 %v281
      %v368 = vunpack.c.l.b16 %v282
      %v369 = vunpack.c.l.b16 %v283
      %v370 = vunpack.c.l.b16 %v284
      %v371 = vunpack.c.l.b16 %v285
      %v372 = vunpack.c.l.b16 %v286
      %v373 = vunpack.c.l.b16 %v287
      %v374 = vunpack.c.l.b16 %v288
      %v375 = vunpack.c.l.b16 %v289
      %v376 = vunpack.c.l.b16 %v290
      %v377 = vpack.c.b16 %v346, %v345
      %v378 = vpack.c.b16 %v348, %v347
      %v379 = vpack.c.b16 %v350, %v349
      %v380 = vpack.c.b16 %v352, %v351
      %v381 = vpack.c.b16 %v354, %v353
      %v382 = vpack.c.b16 %v356, %v355
      %v383 = vpack.c.b16 %v358, %v357
      %v384 = vpack.c.b16 %v360, %v359
      %v385 = vpack.c.b16 %v362, %v361
      %v386 = vpack.c.b16 %v364, %v363
      %v387 = vpack.c.b16 %v366, %v365
      %v388 = vpack.c.b16 %v368, %v367
      %v389 = vpack.c.b16 %v370, %v369
      %v390 = vpack.c.b16 %v372, %v371
      %v391 = vpack.c.b16 %v374, %v373
      %v392 = vpack.c.b16 %v376, %v375
      %409 = vmatprep.subr.bf16.mxu0 0
      %410 = vmatpush1.bf16.msra.mxu0 %v377
      %411 = vmatprep.subr.bf16.mxu0 0
      %412 = vmatpush1.bf16.msra.mxu0 %v378
      %413 = vmatprep.subr.bf16.mxu0 0
      %414 = vmatpush1.bf16.msra.mxu0 %v379
      %415 = vmatprep.subr.bf16.mxu0 0
      %416 = vmatpush1.bf16.msra.mxu0 %v380
      %417 = vmatprep.subr.bf16.mxu0 0
      %418 = vmatpush1.bf16.msra.mxu0 %v381
      %419 = vmatprep.subr.bf16.mxu0 0
      %420 = vmatpush1.bf16.msra.mxu0 %v382
      %421 = vmatprep.subr.bf16.mxu0 0
      %422 = vmatpush1.bf16.msra.mxu0 %v383
      %423 = vmatprep.subr.bf16.mxu0 0
      %424 = vmatpush1.bf16.msra.mxu0 %v384
      %425 = vmatprep.subr.bf16.mxu0 0
      %426 = vmatpush1.bf16.msra.mxu0 %v385
      %427 = vmatprep.subr.bf16.mxu0 0
      %428 = vmatpush1.bf16.msra.mxu0 %v386
      %429 = vmatprep.subr.bf16.mxu0 0
      %430 = vmatpush1.bf16.msra.mxu0 %v387
      %431 = vmatprep.subr.bf16.mxu0 0
      %432 = vmatpush1.bf16.msra.mxu0 %v388
      %433 = vmatprep.subr.bf16.mxu0 0
      %434 = vmatpush1.bf16.msra.mxu0 %v389
      %435 = vmatprep.subr.bf16.mxu0 0
      %436 = vmatpush1.bf16.msra.mxu0 %v390
      %437 = vmatprep.subr.bf16.mxu0 0
      %438 = vmatpush1.bf16.msra.mxu0 %v391
      %439 = vmatprep.subr.bf16.mxu0 0
      %440 = vmatpush1.bf16.msra.mxu0 %v392
      %441 = vmatprep.mubr.bf16.mxu0 %v310
      %442 = vmatmul.mubr.bf16.gmra.mrb[0].mxu0 %v307
      %v443 = vpop.f32.mrb[0].mxu0
      %v444 = vadd.f32 0.0, %v443
      %v445 = vpop.f32.mrb[0].mxu0
      %v446 = vpop.f32.mrb[0].mxu0
      %v447 = vadd.f32 0.0, %v446
      %v448 = vpop.f32.mrb[0].mxu0
      %449 = vdwg.mxu0
      %v484 = vunpack.c.l.b16 %v226
      %v485 = vunpack.c.l.b16 %v227
      %v486 = vunpack.c.l.b16 %v228
      %v487 = vunpack.c.l.b16 %v229
      %v488 = vunpack.c.l.b16 %v230
      %v489 = vunpack.c.l.b16 %v231
      %v490 = vunpack.c.l.b16 %v232
      %v491 = vunpack.c.l.b16 %v233
      %v492 = vunpack.c.l.b16 %v234
      %v493 = vunpack.c.l.b16 %v235
      %v494 = vunpack.c.l.b16 %v236
      %v495 = vunpack.c.l.b16 %v237
      %v496 = vunpack.c.l.b16 %v238
      %v497 = vunpack.c.l.b16 %v239
      %v498 = vunpack.c.l.b16 %v240
      %v499 = vunpack.c.l.b16 %v241
      %v500 = vunpack.c.l.b16 %v242
      %v501 = vunpack.c.l.b16 %v243
      %v502 = vunpack.c.l.b16 %v244
      %v503 = vunpack.c.l.b16 %v245
      %v504 = vunpack.c.l.b16 %v246
      %v505 = vunpack.c.l.b16 %v247
      %v506 = vunpack.c.l.b16 %v248
      %v507 = vunpack.c.l.b16 %v249
      %v508 = vunpack.c.l.b16 %v250
      %v509 = vunpack.c.l.b16 %v251
      %v510 = vunpack.c.l.b16 %v252
      %v511 = vunpack.c.l.b16 %v253
      %v512 = vunpack.c.l.b16 %v254
      %v513 = vunpack.c.l.b16 %v255
      %v514 = vunpack.c.l.b16 %v256
      %v515 = vunpack.c.l.b16 %v257
      %v516 = vpack.c.b16 %v485, %v484
      %v517 = vpack.c.b16 %v487, %v486
      %v518 = vpack.c.b16 %v489, %v488
      %v519 = vpack.c.b16 %v491, %v490
      %v520 = vpack.c.b16 %v493, %v492
      %v521 = vpack.c.b16 %v495, %v494
      %v522 = vpack.c.b16 %v497, %v496
      %v523 = vpack.c.b16 %v499, %v498
      %v524 = vpack.c.b16 %v501, %v500
      %v525 = vpack.c.b16 %v503, %v502
      %v526 = vpack.c.b16 %v505, %v504
      %v527 = vpack.c.b16 %v507, %v506
      %v528 = vpack.c.b16 %v509, %v508
      %v529 = vpack.c.b16 %v511, %v510
      %v530 = vpack.c.b16 %v513, %v512
      %v531 = vpack.c.b16 %v515, %v514
      %548 = vmatprep.subr.bf16.mxu0 0
      %549 = vmatpush1.bf16.msra.mxu0 %v516
      %550 = vmatprep.subr.bf16.mxu0 0
      %551 = vmatpush1.bf16.msra.mxu0 %v517
      %552 = vmatprep.subr.bf16.mxu0 0
      %553 = vmatpush1.bf16.msra.mxu0 %v518
      %554 = vmatprep.subr.bf16.mxu0 0
      %555 = vmatpush1.bf16.msra.mxu0 %v519
      %556 = vmatprep.subr.bf16.mxu0 0
      %557 = vmatpush1.bf16.msra.mxu0 %v520
      %558 = vmatprep.subr.bf16.mxu0 0
      %559 = vmatpush1.bf16.msra.mxu0 %v521
      %560 = vmatprep.subr.bf16.mxu0 0
      %561 = vmatpush1.bf16.msra.mxu0 %v522
      %562 = vmatprep.subr.bf16.mxu0 0
      %563 = vmatpush1.bf16.msra.mxu0 %v523
      %564 = vmatprep.subr.bf16.mxu0 0
      %565 = vmatpush1.bf16.msra.mxu0 %v524
      %566 = vmatprep.subr.bf16.mxu0 0
      %567 = vmatpush1.bf16.msra.mxu0 %v525
      %568 = vmatprep.subr.bf16.mxu0 0
      %569 = vmatpush1.bf16.msra.mxu0 %v526
      %570 = vmatprep.subr.bf16.mxu0 0
      %571 = vmatpush1.bf16.msra.mxu0 %v527
      %572 = vmatprep.subr.bf16.mxu0 0
      %573 = vmatpush1.bf16.msra.mxu0 %v528
      %574 = vmatprep.subr.bf16.mxu0 0
      %575 = vmatpush1.bf16.msra.mxu0 %v529
      %576 = vmatprep.subr.bf16.mxu0 0
      %577 = vmatpush1.bf16.msra.mxu0 %v530
      %578 = vmatprep.subr.bf16.mxu0 0
      %579 = vmatpush1.bf16.msra.mxu0 %v531
      %580 = vmatprep.mubr.bf16.mxu0 %v301
      %581 = vmatmul.mubr.bf16.gmra.mrb[0].mxu0 %v300
      %v582 = vpop.f32.mrb[0].mxu0
      %v583 = vadd.f32 %v444, %v582
      %v584 = vpop.f32.mrb[0].mxu0
      %v585 = vpop.f32.mrb[0].mxu0
      %v586 = vadd.f32 %v447, %v585
      %v587 = vpop.f32.mrb[0].mxu0
      %588 = vdwg.mxu0
      %v589 = vld [vmem:[%s213] sm:$0x1]
      %v591 = vlaneseq
      %v592 = vshrl.u32 %v591, 7
      %v593 = vsub.s32 0, %v592
      %v594 = vrot.slane %v589, %v593
      %v596 = vadd.f32 %v583, %v594
      %v597 = vadd.f32 %v586, %v594
      %vm598 = vcmp.ge.f32.partialorder %v596, 0.0
      %vm599 = vcmp.ge.f32.partialorder %v597, 0.0
      %v600 = vmul.f32 %v596, 0.01
      %v601 = vmul.f32 %v597, 0.01
      %v602 = vsel %vm598, %v596, %v600
      %v603 = vsel %vm599, %v597, %v601
      %v604 = vpack.c.bf16 %v603, %v602
      %v606 = vunpack.c.l.b16 %v604
      %v607 = vunpack.c.h.b16 %v604
      %v608 = vpack.c.b16 %v606, %v606
      %v609 = vpack.c.b16 %v607, %v607
      %vm612 = vcmask 519168
      %613 = vst.msk [vmem:[%s221] sm:$0xf] %vm612, %v608
      %614 = vst.msk [vmem:[%s221 + $0x4] sm:$0xf] %vm612, %v609
      %p615 = scmp.lt.s32.totalorder %s19, 1
      %s616 = scalar_select %p615, %s19, 1
      %p617 = scmp.lt.s32.totalorder %s18, 0
      %s618 = scalar_select %p617, %s18, 0
      %s619 = smul.addr %s616, 2
      %s620 = sadd.s32 %s618, %s619
      %s621 = smul.addr %s620, 4
      %s622 = scalar_lea.vmem %s3, %s621
      // Predicated region
      $region33: #{stargan_discriminator.5} parent=31 // pred_check
        %p623 = pneg %p124
      $region34: #{stargan_discriminator.5} parent=31 // pred_check_branch
        %625 = sbr.rel (%p623) target = $region36
      $region35: #{stargan_discriminator.5} parent=31 // pred_region
        _
      $region36: #{stargan_discriminator.5} parent=31 // pred_fallthru
        _
    $region32: #{stargan_discriminator.5} parent=5 // pred_fallthru
      _
    %p626 = scmp.le.s32.totalorder 2, %s9
    // Predicated region
    $region37: #{stargan_discriminator.5} parent=5 // pred_check
      %p627 = pneg %p626
    $region38: #{stargan_discriminator.5} parent=5 // pred_check_branch
      %629 = sbr.rel (%p627) target = $region40
    $region39: #{stargan_discriminator.5} parent=5 // pred_region
      %s630 = ssub.s32 %s9, 2
      // Predicated region
      $region41: #{stargan_discriminator.5} parent=39 // pred_check
        %p631 = pneg %p130
      $region42: #{stargan_discriminator.5} parent=39 // pred_check_branch
        %633 = sbr.rel (%p631) target = $region44
      $region43: #{stargan_discriminator.5} parent=39 // pred_region
        %p634 = scmp.lt.s32.totalorder %s21, 1
        %s635 = scalar_select %p634, %s21, 1
        %p636 = scmp.lt.s32.totalorder %s20, 0
        %s637 = scalar_select %p636, %s20, 0
        %s638 = smul.addr %s635, 2
        %s639 = sadd.s32 %s637, %s638
        %s640 = smul.addr %s639, 4
        %s641 = scalar_lea.vmem %s3, %s640
      $region44: #{stargan_discriminator.5} parent=39 // pred_fallthru
        _
    $region40: #{stargan_discriminator.5} parent=5 // pred_fallthru
      _
  $region6: #{stargan_discriminator.5} parent=0 // loop_footer
    %s13 = sadd.s32 1, %s9
  $region7: #{stargan_discriminator.5} parent=0 // loop_footer_branch
    %8 = sbr.rel target = $region3
  $region8: #{stargan_discriminator.5} parent=0 // loop_exit
    _

</llo_original>
